<compile_context>
chip_gen: v7x
topology: tpu7x:2x2x1
jax: 0.10.0
libtpu: 0.0.40
codegen_flags: <defaults>
</compile_context>

<pallas_src>
import functools
import math

import jax
import jax.numpy as jnp
from jax import lax
from jax.experimental import pallas as pl
from jax.experimental.pallas import tpu as pltpu

_LANE_WIDTH = 1024      # slab width: wide multiple of 128 -> dense vst/vld
_MAX_TILE_ROWS = 256    # (256, 1024) f32 block = 1 MiB; double-buffered in/out
                        # plus f32 temporaries fits v7x's 64 MiB VMEM easily


def _mix32(x):
    """splitmix32-style finalizer on uint32 bits (full avalanche)."""
    x = x ^ (x >> jnp.uint32(16))
    x = x * jnp.uint32(0x7FEB352D)
    x = x ^ (x >> jnp.uint32(15))
    x = x * jnp.uint32(0x846CA68B)
    x = x ^ (x >> jnp.uint32(16))
    return x


def _uniform_01(h):
    """uint32 bits -> float32 uniform in (0, 1)."""
    m = (h >> jnp.uint32(9)).astype(jnp.int32).astype(jnp.float32)  # [0, 2^23)
    return (m + jnp.float32(0.5)) * jnp.float32(1.0 / (1 << 23))


def gauss_noise_kernel(seed_ref, x_ref, o_ref, *, std, half_rows, width):
    pid = pl.program_id(0)
    seed = seed_ref[0]

    # One 32-bit counter per output *pair* (each pair yields two normals).
    row = lax.broadcasted_iota(jnp.int32, (half_rows, width), 0)
    col = lax.broadcasted_iota(jnp.int32, (half_rows, width), 1)
    ctr = (pid * half_rows + row) * width + col      # unique per pair; wraps ok
    key = seed * jnp.int32(0x61C88647)               # mix the seed in

    x1 = ((ctr * 2) ^ key).astype(jnp.uint32)
    x2 = ((ctr * 2 + 1) ^ key).astype(jnp.uint32)
    u1 = _uniform_01(_mix32(x1))
    u2 = _uniform_01(_mix32(x2))

    # Box-Muller: std folded into the radius, both outputs used.
    r = jnp.float32(std) * jnp.sqrt(jnp.float32(-2.0) * jnp.log(u1))
    theta = jnp.float32(2.0 * math.pi) * u2
    noise = jnp.concatenate([r * jnp.cos(theta), r * jnp.sin(theta)], axis=0)

    o_ref[...] = x_ref[...] + noise.astype(o_ref.dtype)


def gauss_noise(x, seed, *, std=0.1):
    """Adds N(0, std^2) noise to `x` (any shape); noise generated in-kernel."""
    orig_shape = x.shape
    n = math.prod(orig_shape) if orig_shape else 1
    w = _LANE_WIDTH

    flat = x.reshape(-1)
    padded_n = ((n + w - 1) // w) * w
    if padded_n != n:
        # Only the ragged tail is padded; skipped when n % 1024 == 0.
        flat = jnp.pad(flat, (0, padded_n - n))
    rows = padded_n // w
    x2d = flat.reshape(rows, w)

    # Tile rows: multiple of 16 so each Box-Muller half is sublane-aligned (8).
    tile_r = min(_MAX_TILE_ROWS, max(16, ((rows + 15) // 16) * 16))
    grid = (pl.cdiv(rows, tile_r),)

    seed_arr = jnp.asarray([seed], dtype=jnp.int32)

    out2d = pl.pallas_call(
        functools.partial(gauss_noise_kernel, std=std,
                          half_rows=tile_r // 2, width=w),
        out_shape=jax.ShapeDtypeStruct(x2d.shape, x2d.dtype),
        grid_spec=pltpu.PrefetchScalarGridSpec(
            num_scalar_prefetch=1,          # seed lands in SMEM
            grid=grid,
            in_specs=[pl.BlockSpec((tile_r, w), lambda i, seed_ref: (i, 0))],
            out_specs=pl.BlockSpec((tile_r, w), lambda i, seed_ref: (i, 0)),
        ),
        compiler_params=pltpu.CompilerParams(
            dimension_semantics=("parallel",)),
    )(seed_arr, x2d)

    out = out2d.reshape(-1)
    if padded_n != n:
        out = out[:n]
    return out.reshape(orig_shape).astype(x.dtype)


if __name__ == "__main__":
    key = jax.random.PRNGKey(0)
    # NCHW input, same convention as the PyTorch module's typical usage.
    x = jax.random.normal(key, (2, 4, 16, 16), dtype=jnp.float32)

    std = 0.1
    y = jax.block_until_ready(gauss_noise(x, seed=42, std=std))

    assert y.shape == x.shape
    assert y.dtype == x.dtype
    noise = y - x
    # Sanity: noise is finite, zero-mean, and roughly the right scale.
    assert bool(jnp.all(jnp.isfinite(noise)))
    n_std = float(jnp.std(noise))
    n_mean = float(jnp.mean(noise))
    assert 0.5 * std < n_std < 1.5 * std, n_std
    assert abs(n_mean) < 0.05, n_mean

    print("KERNEL_OK")
</pallas_src>

<mosaic_0001>
module attributes {stable_mosaic.version = 11 : i64} {
  func.func @gauss_noise_kernel(%arg0: i32, %arg1: memref<1xi32, #tpu.memory_space<smem>>, %arg2: memref<16x1024xf32, #tpu.memory_space<vmem>>, %arg3: memref<16x1024xf32, #tpu.memory_space<vmem>>) attributes {dimension_semantics = [#tpu.dimension_semantics<parallel>], iteration_bounds = array<i64: 1>, scalar_prefetch = 1 : i64, scratch_operands = 0 : i64, tpu.core_type = #tpu.core_type<tc>, window_params = [{transform_indices = @transform_0, window_bounds = array<i64: 16, 1024>}, {transform_indices = @transform_1, window_bounds = array<i64: 16, 1024>}]} {
    %c0 = arith.constant 0 : index
    %0 = memref.load %arg1[%c0] : memref<1xi32, #tpu.memory_space<smem>>
    %1 = tpu.iota {dimensions = array<i32: 0>} : vector<8x1024xi32>
    %2 = tpu.iota {dimensions = array<i32: 1>} : vector<8x1024xi32>
    %c8_i32 = arith.constant 8 : i32
    %3 = arith.muli %arg0, %c8_i32 : i32
    %4 = vector.broadcast %3 : i32 to vector<8x1024xi32>
    %5 = arith.addi %4, %1 : vector<8x1024xi32>
    %c1024_i32 = arith.constant 1024 : i32
    %6 = vector.broadcast %c1024_i32 : i32 to vector<8x1024xi32>
    %7 = arith.muli %5, %6 : vector<8x1024xi32>
    %8 = arith.addi %7, %2 : vector<8x1024xi32>
    %c1640531527_i32 = arith.constant 1640531527 : i32
    %9 = arith.muli %0, %c1640531527_i32 : i32
    %c2_i32 = arith.constant 2 : i32
    %10 = vector.broadcast %c2_i32 : i32 to vector<8x1024xi32>
    %11 = arith.muli %8, %10 : vector<8x1024xi32>
    %12 = vector.broadcast %9 : i32 to vector<8x1024xi32>
    %13 = arith.xori %11, %12 : vector<8x1024xi32>
    %c2_i32_0 = arith.constant 2 : i32
    %14 = vector.broadcast %c2_i32_0 : i32 to vector<8x1024xi32>
    %15 = arith.muli %8, %14 : vector<8x1024xi32>
    %c1_i32 = arith.constant 1 : i32
    %16 = vector.broadcast %c1_i32 : i32 to vector<8x1024xi32>
    %17 = arith.addi %15, %16 : vector<8x1024xi32>
    %18 = vector.broadcast %9 : i32 to vector<8x1024xi32>
    %19 = arith.xori %17, %18 : vector<8x1024xi32>
    %c16_i32 = arith.constant 16 : i32
    %20 = vector.broadcast %c16_i32 : i32 to vector<8x1024xi32>
    %21 = arith.shrui %13, %20 : vector<8x1024xi32>
    %22 = arith.xori %13, %21 : vector<8x1024xi32>
    %c2146121005_i32 = arith.constant 2146121005 : i32
    %23 = vector.broadcast %c2146121005_i32 : i32 to vector<8x1024xi32>
    %24 = arith.muli %22, %23 : vector<8x1024xi32>
    %c15_i32 = arith.constant 15 : i32
    %25 = vector.broadcast %c15_i32 : i32 to vector<8x1024xi32>
    %26 = arith.shrui %24, %25 : vector<8x1024xi32>
    %27 = arith.xori %24, %26 : vector<8x1024xi32>
    %c-2073254261_i32 = arith.constant -2073254261 : i32
    %28 = vector.broadcast %c-2073254261_i32 : i32 to vector<8x1024xi32>
    %29 = arith.muli %27, %28 : vector<8x1024xi32>
    %c16_i32_1 = arith.constant 16 : i32
    %30 = vector.broadcast %c16_i32_1 : i32 to vector<8x1024xi32>
    %31 = arith.shrui %29, %30 : vector<8x1024xi32>
    %32 = arith.xori %29, %31 : vector<8x1024xi32>
    %c9_i32 = arith.constant 9 : i32
    %33 = vector.broadcast %c9_i32 : i32 to vector<8x1024xi32>
    %34 = arith.shrui %32, %33 : vector<8x1024xi32>
    %35 = arith.sitofp %34 : vector<8x1024xi32> to vector<8x1024xf32>
    %cst = arith.constant 5.000000e-01 : f32
    %36 = vector.broadcast %cst : f32 to vector<8x1024xf32>
    %37 = arith.addf %35, %36 : vector<8x1024xf32>
    %cst_2 = arith.constant 1.1920929E-7 : f32
    %38 = vector.broadcast %cst_2 : f32 to vector<8x1024xf32>
    %39 = arith.mulf %37, %38 : vector<8x1024xf32>
    %c16_i32_3 = arith.constant 16 : i32
    %40 = vector.broadcast %c16_i32_3 : i32 to vector<8x1024xi32>
    %41 = arith.shrui %19, %40 : vector<8x1024xi32>
    %42 = arith.xori %19, %41 : vector<8x1024xi32>
    %c2146121005_i32_4 = arith.constant 2146121005 : i32
    %43 = vector.broadcast %c2146121005_i32_4 : i32 to vector<8x1024xi32>
    %44 = arith.muli %42, %43 : vector<8x1024xi32>
    %c15_i32_5 = arith.constant 15 : i32
    %45 = vector.broadcast %c15_i32_5 : i32 to vector<8x1024xi32>
    %46 = arith.shrui %44, %45 : vector<8x1024xi32>
    %47 = arith.xori %44, %46 : vector<8x1024xi32>
    %c-2073254261_i32_6 = arith.constant -2073254261 : i32
    %48 = vector.broadcast %c-2073254261_i32_6 : i32 to vector<8x1024xi32>
    %49 = arith.muli %47, %48 : vector<8x1024xi32>
    %c16_i32_7 = arith.constant 16 : i32
    %50 = vector.broadcast %c16_i32_7 : i32 to vector<8x1024xi32>
    %51 = arith.shrui %49, %50 : vector<8x1024xi32>
    %52 = arith.xori %49, %51 : vector<8x1024xi32>
    %c9_i32_8 = arith.constant 9 : i32
    %53 = vector.broadcast %c9_i32_8 : i32 to vector<8x1024xi32>
    %54 = arith.shrui %52, %53 : vector<8x1024xi32>
    %55 = arith.sitofp %54 : vector<8x1024xi32> to vector<8x1024xf32>
    %cst_9 = arith.constant 5.000000e-01 : f32
    %56 = vector.broadcast %cst_9 : f32 to vector<8x1024xf32>
    %57 = arith.addf %55, %56 : vector<8x1024xf32>
    %cst_10 = arith.constant 1.1920929E-7 : f32
    %58 = vector.broadcast %cst_10 : f32 to vector<8x1024xf32>
    %59 = arith.mulf %57, %58 : vector<8x1024xf32>
    %60 = math.log %39 : vector<8x1024xf32>
    %cst_11 = arith.constant -2.000000e+00 : f32
    %61 = vector.broadcast %cst_11 : f32 to vector<8x1024xf32>
    %62 = arith.mulf %61, %60 : vector<8x1024xf32>
    %63 = math.sqrt %62 : vector<8x1024xf32>
    %cst_12 = arith.constant 1.000000e-01 : f32
    %64 = vector.broadcast %cst_12 : f32 to vector<8x1024xf32>
    %65 = arith.mulf %64, %63 : vector<8x1024xf32>
    %cst_13 = arith.constant 6.28318548 : f32
    %66 = vector.broadcast %cst_13 : f32 to vector<8x1024xf32>
    %67 = arith.mulf %66, %59 : vector<8x1024xf32>
    %68 = math.cos %67 : vector<8x1024xf32>
    %69 = arith.mulf %65, %68 : vector<8x1024xf32>
    %70 = math.sin %67 : vector<8x1024xf32>
    %71 = arith.mulf %65, %70 : vector<8x1024xf32>
    %72 = tpu.concatenate %69, %71 in 0 : vector<8x1024xf32>, vector<8x1024xf32> -> vector<16x1024xf32>
    %c0_14 = arith.constant 0 : index
    %c0_15 = arith.constant 0 : index
    %73 = vector.load %arg2[%c0_14, %c0_15] : memref<16x1024xf32, #tpu.memory_space<vmem>>, vector<16x1024xf32>
    %74 = arith.addf %73, %72 : vector<16x1024xf32>
    %c0_16 = arith.constant 0 : index
    %c0_17 = arith.constant 0 : index
    %75 = vector.load %arg3[%c0_16, %c0_17] : memref<16x1024xf32, #tpu.memory_space<vmem>>, vector<16x1024xf32>
    tpu.vector_store %arg3[%c0_16, %c0_17], %74 {strides = array<i32>} : memref<16x1024xf32, #tpu.memory_space<vmem>>, vector<16x1024xf32>,
    return
  }
  func.func @transform_0(%arg0: i32, %arg1: memref<1xi32, #tpu.memory_space<smem>>) -> (i32, i32) {
    %c0_i32 = arith.constant 0 : i32
    %c0_i32_0 = arith.constant 0 : i32
    return %arg0, %c0_i32 : i32, i32
  }
  func.func @transform_1(%arg0: i32, %arg1: memref<1xi32, #tpu.memory_space<smem>>) -> (i32, i32) {
    %c0_i32 = arith.constant 0 : i32
    %c0_i32_0 = arith.constant 0 : i32
    return %arg0, %c0_i32 : i32, i32
  }
}

</mosaic_0001>

<llo_original>
// kernel: tpu_custom_call.1
$region0: #{tpu_custom_call.1}
  #allocation0 [shape = 'u32[]', space=smem, size = 0x4, offset = 0x4, fixed_abs, tag = 'smem constant byte address 0x4 - core index']
  #allocation1 [shape = 'u32[144,128]{1,0:T(1,128)}', space=vmem, size = 0x12000, scoped, tag = 'internal scratch']
  #allocation2 [shape = 's32[1]{0}', space=sflag, size = 0x4, scoped, tag = 'scoped memory for tpu_custom_call.1']
  #allocation3 [shape = 's32[1]{0:T(128)S(6)}', space=smem, size = 0x200, scoped, tag = 'prefetched SMEM operand 0']
  %s0 = inlined_call_operand.<no memory space> [shape: s32[1], index: 0, kind: input, shape index: {}]
  %s1 = inlined_call_operand.hbm [shape: f32[2,1024], index: 1, kind: input, shape index: {}]
  %s2 = inlined_call_operand.hbm [shape: f32[2,1024], index: 2, kind: output, shape index: {}]
  %s3 = sld [smem:[#allocation0]]
  $region18: #{tpu_custom_call.1} parent=0
    _
  %s5 = ssub.s32 1, %s3
  %s6 = scalar_select 0, %s5, %s3
  %7 = sst [smem:[#allocation3]] %s0
  $region1: #{tpu_custom_call.1} parent=0
    #allocation4 [shape = 'u8[65536]{0}', space=vmem, size = 0x10000, scoped, tag = 'input window, operand 1, single buffered']
    #allocation5 [shape = 's32[1]{0}', space=sflag, size = 0x4, scoped, tag = 'scoped memory for tpu_custom_call.1']
    #allocation6 [shape = 's32[1]{0}', space=sflag, size = 0x4, scoped, tag = 'scoped memory for tpu_custom_call.1']
    #allocation7 [shape = 'u8[65536]{0}', space=vmem, size = 0x10000, scoped, tag = 'output window, operand 0, single buffered']
    %8 = vsyncpa [#allocation5], 0
    %9 = vsyncpa [#allocation6], 0
    // Predicated region
    $region2: #{tpu_custom_call.1} parent=1 // pred_check
      _
    $region3: #{tpu_custom_call.1} parent=1 // pred_check_branch
      %11 = sbr.rel (0) target = $region5
    $region4: #{tpu_custom_call.1} parent=1 // pred_region
      %s13 = ssub.s32 2048, 256
      %14 = vsyncadd [#allocation5], %s13
      %s15 = sshll.u32 [#allocation4], 4
      %s16 = int_to_ptr.vmem [resolvable:$true] %s15
      %21 = dma.hbm_to_vmem [thread:$0]  %s1, 256, %s16, [#allocation5], 256, 256, 16
    $region5: #{tpu_custom_call.1} parent=1 // pred_fallthru
      _
    // Predicated region
    $region6: #{tpu_custom_call.1} parent=1 // pred_check
      _
    $region7: #{tpu_custom_call.1} parent=1 // pred_check_branch
      %23 = sbr.rel (0) target = $region9
    $region8: #{tpu_custom_call.1} parent=1 // pred_region
      %24 = dma.done [#allocation5], 2048
    $region9: #{tpu_custom_call.1} parent=1 // pred_fallthru
      _
    %s25 = sld [smem:[#allocation3]]
    %v26 = vlaneseq
    %v27 = vshrl.u32 %v26, 7
    %v28 = vlaneseq
    %v29 = vand.u32 %v28, 127
    %v30 = vadd.s32 %v29, 128
    %v31 = vadd.s32 %v29, 256
    %v32 = vadd.s32 %v29, 384
    %v33 = vadd.s32 %v29, 512
    %v34 = vadd.s32 %v29, 640
    %v35 = vadd.s32 %v29, 768
    %v36 = vadd.s32 %v29, 896
    %s37 = smul.u32 0, 8
    %v38 = vstv %s37
    %v39 = vadd.s32 %v38, %v27
    %v40 = vmul.u32 %v39, 1024
    %v41 = vadd.s32 %v40, %v29
    %v42 = vadd.s32 %v40, %v30
    %v43 = vadd.s32 %v40, %v31
    %v44 = vadd.s32 %v40, %v32
    %v45 = vadd.s32 %v40, %v33
    %v46 = vadd.s32 %v40, %v34
    %v47 = vadd.s32 %v40, %v35
    %v48 = vadd.s32 %v40, %v36
    %s49 = smul.u32 %s25, 1640531527
    %v50 = vmul.u32 %v41, 2
    %v51 = vmul.u32 %v42, 2
    %v52 = vmul.u32 %v43, 2
    %v53 = vmul.u32 %v44, 2
    %v54 = vmul.u32 %v45, 2
    %v55 = vmul.u32 %v46, 2
    %v56 = vmul.u32 %v47, 2
    %v57 = vmul.u32 %v48, 2
    %v58 = vstv %s49
    %v59 = vxor.u32 %v50, %v58
    %v60 = vxor.u32 %v51, %v58
    %v61 = vxor.u32 %v52, %v58
    %v62 = vxor.u32 %v53, %v58
    %v63 = vxor.u32 %v54, %v58
    %v64 = vxor.u32 %v55, %v58
    %v65 = vxor.u32 %v56, %v58
    %v66 = vxor.u32 %v57, %v58
    %v67 = vadd.s32 %v50, 1
    %v68 = vadd.s32 %v51, 1
    %v69 = vadd.s32 %v52, 1
    %v70 = vadd.s32 %v53, 1
    %v71 = vadd.s32 %v54, 1
    %v72 = vadd.s32 %v55, 1
    %v73 = vadd.s32 %v56, 1
    %v74 = vadd.s32 %v57, 1
    %v75 = vxor.u32 %v67, %v58
    %v76 = vxor.u32 %v68, %v58
    %v77 = vxor.u32 %v69, %v58
    %v78 = vxor.u32 %v70, %v58
    %v79 = vxor.u32 %v71, %v58
    %v80 = vxor.u32 %v72, %v58
    %v81 = vxor.u32 %v73, %v58
    %v82 = vxor.u32 %v74, %v58
    %v83 = vshrl.u32 %v59, 16
    %v84 = vshrl.u32 %v60, 16
    %v85 = vshrl.u32 %v61, 16
    %v86 = vshrl.u32 %v62, 16
    %v87 = vshrl.u32 %v63, 16
    %v88 = vshrl.u32 %v64, 16
    %v89 = vshrl.u32 %v65, 16
    %v90 = vshrl.u32 %v66, 16
    %v91 = vxor.u32 %v59, %v83
    %v92 = vxor.u32 %v60, %v84
    %v93 = vxor.u32 %v61, %v85
    %v94 = vxor.u32 %v62, %v86
    %v95 = vxor.u32 %v63, %v87
    %v96 = vxor.u32 %v64, %v88
    %v97 = vxor.u32 %v65, %v89
    %v98 = vxor.u32 %v66, %v90
    %v99 = vmul.u32 %v91, 2146121005
    %v100 = vmul.u32 %v92, 2146121005
    %v101 = vmul.u32 %v93, 2146121005
    %v102 = vmul.u32 %v94, 2146121005
    %v103 = vmul.u32 %v95, 2146121005
    %v104 = vmul.u32 %v96, 2146121005
    %v105 = vmul.u32 %v97, 2146121005
    %v106 = vmul.u32 %v98, 2146121005
    %v107 = vshrl.u32 %v99, 15
    %v108 = vshrl.u32 %v100, 15
    %v109 = vshrl.u32 %v101, 15
    %v110 = vshrl.u32 %v102, 15
    %v111 = vshrl.u32 %v103, 15
    %v112 = vshrl.u32 %v104, 15
    %v113 = vshrl.u32 %v105, 15
    %v114 = vshrl.u32 %v106, 15
    %v115 = vxor.u32 %v99, %v107
    %v116 = vxor.u32 %v100, %v108
    %v117 = vxor.u32 %v101, %v109
    %v118 = vxor.u32 %v102, %v110
    %v119 = vxor.u32 %v103, %v111
    %v120 = vxor.u32 %v104, %v112
    %v121 = vxor.u32 %v105, %v113
    %v122 = vxor.u32 %v106, %v114
    %v123 = vmul.u32 %v115, 2221713035
    %v124 = vmul.u32 %v116, 2221713035
    %v125 = vmul.u32 %v117, 2221713035
    %v126 = vmul.u32 %v118, 2221713035
    %v127 = vmul.u32 %v119, 2221713035
    %v128 = vmul.u32 %v120, 2221713035
    %v129 = vmul.u32 %v121, 2221713035
    %v130 = vmul.u32 %v122, 2221713035
    %v131 = vshrl.u32 %v123, 16
    %v132 = vshrl.u32 %v124, 16
    %v133 = vshrl.u32 %v125, 16
    %v134 = vshrl.u32 %v126, 16
    %v135 = vshrl.u32 %v127, 16
    %v136 = vshrl.u32 %v128, 16
    %v137 = vshrl.u32 %v129, 16
    %v138 = vshrl.u32 %v130, 16
    %v139 = vxor.u32 %v123, %v131
    %v140 = vxor.u32 %v124, %v132
    %v141 = vxor.u32 %v125, %v133
    %v142 = vxor.u32 %v126, %v134
    %v143 = vxor.u32 %v127, %v135
    %v144 = vxor.u32 %v128, %v136
    %v145 = vxor.u32 %v129, %v137
    %v146 = vxor.u32 %v130, %v138
    %v147 = vshrl.u32 %v139, 9
    %v148 = vshrl.u32 %v140, 9
    %v149 = vshrl.u32 %v141, 9
    %v150 = vshrl.u32 %v142, 9
    %v151 = vshrl.u32 %v143, 9
    %v152 = vshrl.u32 %v144, 9
    %v153 = vshrl.u32 %v145, 9
    %v154 = vshrl.u32 %v146, 9
    %v155 = vcvt.s32.f32 %v147
    %v156 = vcvt.s32.f32 %v148
    %v157 = vcvt.s32.f32 %v149
    %v158 = vcvt.s32.f32 %v150
    %v159 = vcvt.s32.f32 %v151
    %v160 = vcvt.s32.f32 %v152
    %v161 = vcvt.s32.f32 %v153
    %v162 = vcvt.s32.f32 %v154
    %v163 = vadd.f32 %v155, 0.5
    %v164 = vadd.f32 %v156, 0.5
    %v165 = vadd.f32 %v157, 0.5
    %v166 = vadd.f32 %v158, 0.5
    %v167 = vadd.f32 %v159, 0.5
    %v168 = vadd.f32 %v160, 0.5
    %v169 = vadd.f32 %v161, 0.5
    %v170 = vadd.f32 %v162, 0.5
    %v171 = vmul.f32 %v163, 1.1920929e-07
    %v172 = vmul.f32 %v164, 1.1920929e-07
    %v173 = vmul.f32 %v165, 1.1920929e-07
    %v174 = vmul.f32 %v166, 1.1920929e-07
    %v175 = vmul.f32 %v167, 1.1920929e-07
    %v176 = vmul.f32 %v168, 1.1920929e-07
    %v177 = vmul.f32 %v169, 1.1920929e-07
    %v178 = vmul.f32 %v170, 1.1920929e-07
    %v179 = vshrl.u32 %v75, 16
    %v180 = vshrl.u32 %v76, 16
    %v181 = vshrl.u32 %v77, 16
    %v182 = vshrl.u32 %v78, 16
    %v183 = vshrl.u32 %v79, 16
    %v184 = vshrl.u32 %v80, 16
    %v185 = vshrl.u32 %v81, 16
    %v186 = vshrl.u32 %v82, 16
    %v187 = vxor.u32 %v75, %v179
    %v188 = vxor.u32 %v76, %v180
    %v189 = vxor.u32 %v77, %v181
    %v190 = vxor.u32 %v78, %v182
    %v191 = vxor.u32 %v79, %v183
    %v192 = vxor.u32 %v80, %v184
    %v193 = vxor.u32 %v81, %v185
    %v194 = vxor.u32 %v82, %v186
    %v195 = vmul.u32 %v187, 2146121005
    %v196 = vmul.u32 %v188, 2146121005
    %v197 = vmul.u32 %v189, 2146121005
    %v198 = vmul.u32 %v190, 2146121005
    %v199 = vmul.u32 %v191, 2146121005
    %v200 = vmul.u32 %v192, 2146121005
    %v201 = vmul.u32 %v193, 2146121005
    %v202 = vmul.u32 %v194, 2146121005
    %v203 = vshrl.u32 %v195, 15
    %v204 = vshrl.u32 %v196, 15
    %v205 = vshrl.u32 %v197, 15
    %v206 = vshrl.u32 %v198, 15
    %v207 = vshrl.u32 %v199, 15
    %v208 = vshrl.u32 %v200, 15
    %v209 = vshrl.u32 %v201, 15
    %v210 = vshrl.u32 %v202, 15
    %v211 = vxor.u32 %v195, %v203
    %v212 = vxor.u32 %v196, %v204
    %v213 = vxor.u32 %v197, %v205
    %v214 = vxor.u32 %v198, %v206
    %v215 = vxor.u32 %v199, %v207
    %v216 = vxor.u32 %v200, %v208
    %v217 = vxor.u32 %v201, %v209
    %v218 = vxor.u32 %v202, %v210
    %v219 = vmul.u32 %v211, 2221713035
    %v220 = vmul.u32 %v212, 2221713035
    %v221 = vmul.u32 %v213, 2221713035
    %v222 = vmul.u32 %v214, 2221713035
    %v223 = vmul.u32 %v215, 2221713035
    %v224 = vmul.u32 %v216, 2221713035
    %v225 = vmul.u32 %v217, 2221713035
    %v226 = vmul.u32 %v218, 2221713035
    %v227 = vshrl.u32 %v219, 16
    %v228 = vshrl.u32 %v220, 16
    %v229 = vshrl.u32 %v221, 16
    %v230 = vshrl.u32 %v222, 16
    %v231 = vshrl.u32 %v223, 16
    %v232 = vshrl.u32 %v224, 16
    %v233 = vshrl.u32 %v225, 16
    %v234 = vshrl.u32 %v226, 16
    %v235 = vxor.u32 %v219, %v227
    %v236 = vxor.u32 %v220, %v228
    %v237 = vxor.u32 %v221, %v229
    %v238 = vxor.u32 %v222, %v230
    %v239 = vxor.u32 %v223, %v231
    %v240 = vxor.u32 %v224, %v232
    %v241 = vxor.u32 %v225, %v233
    %v242 = vxor.u32 %v226, %v234
    %v243 = vshrl.u32 %v235, 9
    %v244 = vshrl.u32 %v236, 9
    %v245 = vshrl.u32 %v237, 9
    %v246 = vshrl.u32 %v238, 9
    %v247 = vshrl.u32 %v239, 9
    %v248 = vshrl.u32 %v240, 9
    %v249 = vshrl.u32 %v241, 9
    %v250 = vshrl.u32 %v242, 9
    %v251 = vcvt.s32.f32 %v243
    %v252 = vcvt.s32.f32 %v244
    %v253 = vcvt.s32.f32 %v245
    %v254 = vcvt.s32.f32 %v246
    %v255 = vcvt.s32.f32 %v247
    %v256 = vcvt.s32.f32 %v248
    %v257 = vcvt.s32.f32 %v249
    %v258 = vcvt.s32.f32 %v250
    %v259 = vadd.f32 %v251, 0.5
    %v260 = vadd.f32 %v252, 0.5
    %v261 = vadd.f32 %v253, 0.5
    %v262 = vadd.f32 %v254, 0.5
    %v263 = vadd.f32 %v255, 0.5
    %v264 = vadd.f32 %v256, 0.5
    %v265 = vadd.f32 %v257, 0.5
    %v266 = vadd.f32 %v258, 0.5
    %v267 = vmul.f32 %v259, 1.1920929e-07
    %v268 = vmul.f32 %v260, 1.1920929e-07
    %v269 = vmul.f32 %v261, 1.1920929e-07
    %v270 = vmul.f32 %v262, 1.1920929e-07
    %v271 = vmul.f32 %v263, 1.1920929e-07
    %v272 = vmul.f32 %v264, 1.1920929e-07
    %v273 = vmul.f32 %v265, 1.1920929e-07
    %v274 = vmul.f32 %v266, 1.1920929e-07
    %v275 = vlog2.pop %v171
    %v276 = vmul.f32 %v275, 0.6931472
    %v277 = vlog2.pop %v172
    %v278 = vmul.f32 %v277, 0.6931472
    %v279 = vlog2.pop %v173
    %v280 = vmul.f32 %v279, 0.6931472
    %v281 = vlog2.pop %v174
    %v282 = vmul.f32 %v281, 0.6931472
    %v283 = vlog2.pop %v175
    %v284 = vmul.f32 %v283, 0.6931472
    %v285 = vlog2.pop %v176
    %v286 = vmul.f32 %v285, 0.6931472
    %v287 = vlog2.pop %v177
    %v288 = vmul.f32 %v287, 0.6931472
    %v289 = vlog2.pop %v178
    %v290 = vmul.f32 %v289, 0.6931472
    %v291 = vmul.f32 %v276, -2.0
    %v292 = vmul.f32 %v278, -2.0
    %v293 = vmul.f32 %v280, -2.0
    %v294 = vmul.f32 %v282, -2.0
    %v295 = vmul.f32 %v284, -2.0
    %v296 = vmul.f32 %v286, -2.0
    %v297 = vmul.f32 %v288, -2.0
    %v298 = vmul.f32 %v290, -2.0
    %v299 = vrsqrt.pop %v291
    %v300 = vmul.f32 %v291, %v299
    %vm301 = vcmp.eq.f32.partialorder %v291, inf
    %v302 = vsel %vm301, %v291, %v300
    %vm303 = vcmp.eq.f32.partialorder %v291, 0.0
    %v304 = vand.u32 %v291, 2147483648
    %v305 = vsel %vm303, %v304, %v302
    %v306 = vrsqrt.pop %v292
    %v307 = vmul.f32 %v292, %v306
    %vm308 = vcmp.eq.f32.partialorder %v292, inf
    %v309 = vsel %vm308, %v292, %v307
    %vm310 = vcmp.eq.f32.partialorder %v292, 0.0
    %v311 = vand.u32 %v292, 2147483648
    %v312 = vsel %vm310, %v311, %v309
    %v313 = vrsqrt.pop %v293
    %v314 = vmul.f32 %v293, %v313
    %vm315 = vcmp.eq.f32.partialorder %v293, inf
    %v316 = vsel %vm315, %v293, %v314
    %vm317 = vcmp.eq.f32.partialorder %v293, 0.0
    %v318 = vand.u32 %v293, 2147483648
    %v319 = vsel %vm317, %v318, %v316
    %v320 = vrsqrt.pop %v294
    %v321 = vmul.f32 %v294, %v320
    %vm322 = vcmp.eq.f32.partialorder %v294, inf
    %v323 = vsel %vm322, %v294, %v321
    %vm324 = vcmp.eq.f32.partialorder %v294, 0.0
    %v325 = vand.u32 %v294, 2147483648
    %v326 = vsel %vm324, %v325, %v323
    %v327 = vrsqrt.pop %v295
    %v328 = vmul.f32 %v295, %v327
    %vm329 = vcmp.eq.f32.partialorder %v295, inf
    %v330 = vsel %vm329, %v295, %v328
    %vm331 = vcmp.eq.f32.partialorder %v295, 0.0
    %v332 = vand.u32 %v295, 2147483648
    %v333 = vsel %vm331, %v332, %v330
    %v334 = vrsqrt.pop %v296
    %v335 = vmul.f32 %v296, %v334
    %vm336 = vcmp.eq.f32.partialorder %v296, inf
    %v337 = vsel %vm336, %v296, %v335
    %vm338 = vcmp.eq.f32.partialorder %v296, 0.0
    %v339 = vand.u32 %v296, 2147483648
    %v340 = vsel %vm338, %v339, %v337
    %v341 = vrsqrt.pop %v297
    %v342 = vmul.f32 %v297, %v341
    %vm343 = vcmp.eq.f32.partialorder %v297, inf
    %v344 = vsel %vm343, %v297, %v342
    %vm345 = vcmp.eq.f32.partialorder %v297, 0.0
    %v346 = vand.u32 %v297, 2147483648
    %v347 = vsel %vm345, %v346, %v344
    %v348 = vrsqrt.pop %v298
    %v349 = vmul.f32 %v298, %v348
    %vm350 = vcmp.eq.f32.partialorder %v298, inf
    %v351 = vsel %vm350, %v298, %v349
    %vm352 = vcmp.eq.f32.partialorder %v298, 0.0
    %v353 = vand.u32 %v298, 2147483648
    %v354 = vsel %vm352, %v353, %v351
    %v355 = vmul.f32 %v305, 0.1
    %v356 = vmul.f32 %v312, 0.1
    %v357 = vmul.f32 %v319, 0.1
    %v358 = vmul.f32 %v326, 0.1
    %v359 = vmul.f32 %v333, 0.1
    %v360 = vmul.f32 %v340, 0.1
    %v361 = vmul.f32 %v347, 0.1
    %v362 = vmul.f32 %v354, 0.1
    %v363 = vmul.f32 %v267, 6.2831855
    %v364 = vmul.f32 %v268, 6.2831855
    %v365 = vmul.f32 %v269, 6.2831855
    %v366 = vmul.f32 %v270, 6.2831855
    %v367 = vmul.f32 %v271, 6.2831855
    %v368 = vmul.f32 %v272, 6.2831855
    %v369 = vmul.f32 %v273, 6.2831855
    %v370 = vmul.f32 %v274, 6.2831855
    %v371 = vand.u32 2147483647, %v363
    %vm372 = vcmp.le.f32.partialorder %v371, 0.7853982
    %vm373 = vcmp.lt.s32.totalorder %v363, 0
    %v374 = vand.u32 %v363, 2139095040
    %v375 = vshrl.u32 %v374, 23
    %v376 = vsub.s32 %v375, 127
    %v377 = vand.u32 2147483647, %v363
    %v378 = vand.u32 %v377, 8388607
    %v379 = vor.u32 %v378, 8388608
    %v380 = vsub.s32 0, %v379
    %v381 = vadd.s32 %v376, 1
    %vm382 = vcmp.gt.s32.totalorder %v381, 0
    %v383 = vsel %vm382, %v381, 0
    %v384 = vshrl.u32 %v383, 5
    %v385 = vand.u32 %v383, 31
    %v386 = vsub.s32 32, %v385
    %v387 = vshrl.u32 683565275, %v386
    %v388 = vshll.u32 683565275, %v385
    %v389 = vshrl.u32 2475754826, %v386
    %v390 = vor.u32 %v388, %v389
    %v391 = vshll.u32 2475754826, %v385
    %v392 = vshrl.u32 2131351028, %v386
    %v393 = vor.u32 %v391, %v392
    %v394 = vshll.u32 2131351028, %v385
    %v395 = vshrl.u32 2102212464, %v386
    %v396 = vor.u32 %v394, %v395
    %v397 = vshll.u32 2102212464, %v385
    %v398 = vshrl.u32 920167782, %v386
    %v399 = vor.u32 %v397, %v398
    %v400 = vshll.u32 920167782, %v385
    %v401 = vshrl.u32 1326507024, %v386
    %v402 = vor.u32 %v400, %v401
    %vm403 = vcmp.lt.s32.totalorder %v384, 1
    %vm404 = vcmp.lt.s32.totalorder %v384, 2
    %vm405 = vcmp.lt.s32.totalorder %v384, 3
    %vm406 = vcmp.lt.s32.totalorder %v384, 4
    %v407 = vsel %vm403, %v387, %v390
    %v408 = vsel %vm406, %v396, 2102212464
    %v409 = vsel %vm405, %v393, %v408
    %v410 = vsel %vm404, %v407, %v409
    %v411 = vsel %vm403, %v390, %v393
    %v412 = vsel %vm406, %v399, 920167782
    %v413 = vsel %vm405, %v396, %v412
    %v414 = vsel %vm404, %v411, %v413
    %v415 = vsel %vm403, %v393, %v396
    %v416 = vsel %vm406, %v402, 1326507024
    %v417 = vsel %vm405, %v399, %v416
    %v418 = vsel %vm404, %v415, %v417
    %v419 = vshll.u32 %v379, 8
    %v420 = vmul.u32.u64.compose %v419, %v418
    %v421 = vextract.low.u32 %v420
    %v422 = vextract.high.u32 %v420
    %v423 = vmul.u32.u64.compose %v419, %v414
    %v424 = vextract.low.u32 %v423
    %v425 = vextract.high.u32 %v423
    %v426 = vmul.u32 %v419, %v410
    %v427 = vadd.s32 %v422, %v424
    %vm428 = vc.u32 %v422, %v424
    %v429 = vadd.s32 %v425, 1
    %v430 = vsel %vm428, %v429, %v425
    %v431 = vadd.s32 %v426, %v430
    %v432 = vadd.s32 %v431, 536870912
    %v433 = vshrl.u32 %v432, 30
    %v434 = vshll.u32 %v433, 30
    %v435 = vsub.s32 %v431, %v434
    %vm436 = vcmp.lt.s32.totalorder %v435, 0
    %v437 = vsub.s32 0, %v435
    %v438 = vsel %vm436, %v437, %v435
    %v439 = vclz %v438
    %v440 = vsub.s32 %v439, 2
    %vm441 = vcmp.gt.s32.totalorder 0, %v440
    %v442 = vsel %vm441, 0, %v440
    %v443 = vsub.s32 32, %v442
    %v444 = vshll.u32 %v435, %v442
    %v445 = vshrl.u32 %v427, %v443
    %v446 = vor.u32 %v444, %v445
    %v447 = vsub.s32 4294967266, %v442
    %v448 = vadd.s32 %v447, 127
    %v449 = vshll.u32 %v448, 23
    %v450 = vor.u32 4788187, %v449
    %v451 = vand.u32 2147483647, %v450
    %v453 = vcvt.s32.f32 %v446
    %v454 = vmul.f32 %v453, %v451
    %v455 = vxor.u32 %v454, 2147483648
    %v456 = vsel %vm373, %v455, %v454
    %v457 = vsub.s32 4, %v433
    %v458 = vsel %vm373, %v457, %v433
    %v459 = vsel %vm372, %v363, %v456
    %v460 = vsel %vm372, 0, %v458
    %v461 = vcosq.f32.pop %v459
    %v462 = vsinq.f32.pop %v459
    %vm463 = vweird.f32 %v363
    %v464 = vand.u32 %v460, 3
    %vm465 = vcmp.lt.s32.totalorder %v464, 2
    %vm466 = vcmp.eq.s32.totalorder %v464, 0
    %v467 = vxor.u32 %v462, 2147483648
    %v468 = vsel %vm466, %v461, %v467
    %vm469 = vcmp.eq.s32.totalorder %v464, 2
    %v470 = vxor.u32 %v461, 2147483648
    %v471 = vsel %vm469, %v470, %v462
    %v472 = vsel %vm465, %v468, %v471
    %v473 = vsel %vm463, nan, %v472
    %v474 = vand.u32 2147483647, %v364
    %vm475 = vcmp.le.f32.partialorder %v474, 0.7853982
    %vm476 = vcmp.lt.s32.totalorder %v364, 0
    %v477 = vand.u32 %v364, 2139095040
    %v478 = vshrl.u32 %v477, 23
    %v479 = vsub.s32 %v478, 127
    %v480 = vand.u32 2147483647, %v364
    %v481 = vand.u32 %v480, 8388607
    %v482 = vor.u32 %v481, 8388608
    %v483 = vsub.s32 0, %v482
    %v484 = vadd.s32 %v479, 1
    %vm485 = vcmp.gt.s32.totalorder %v484, 0
    %v486 = vsel %vm485, %v484, 0
    %v487 = vshrl.u32 %v486, 5
    %v488 = vand.u32 %v486, 31
    %v489 = vsub.s32 32, %v488
    %v490 = vshrl.u32 683565275, %v489
    %v491 = vshll.u32 683565275, %v488
    %v492 = vshrl.u32 2475754826, %v489
    %v493 = vor.u32 %v491, %v492
    %v494 = vshll.u32 2475754826, %v488
    %v495 = vshrl.u32 2131351028, %v489
    %v496 = vor.u32 %v494, %v495
    %v497 = vshll.u32 2131351028, %v488
    %v498 = vshrl.u32 2102212464, %v489
    %v499 = vor.u32 %v497, %v498
    %v500 = vshll.u32 2102212464, %v488
    %v501 = vshrl.u32 920167782, %v489
    %v502 = vor.u32 %v500, %v501
    %v503 = vshll.u32 920167782, %v488
    %v504 = vshrl.u32 1326507024, %v489
    %v505 = vor.u32 %v503, %v504
    %vm506 = vcmp.lt.s32.totalorder %v487, 1
    %vm507 = vcmp.lt.s32.totalorder %v487, 2
    %vm508 = vcmp.lt.s32.totalorder %v487, 3
    %vm509 = vcmp.lt.s32.totalorder %v487, 4
    %v510 = vsel %vm506, %v490, %v493
    %v511 = vsel %vm509, %v499, 2102212464
    %v512 = vsel %vm508, %v496, %v511
    %v513 = vsel %vm507, %v510, %v512
    %v514 = vsel %vm506, %v493, %v496
    %v515 = vsel %vm509, %v502, 920167782
    %v516 = vsel %vm508, %v499, %v515
    %v517 = vsel %vm507, %v514, %v516
    %v518 = vsel %vm506, %v496, %v499
    %v519 = vsel %vm509, %v505, 1326507024
    %v520 = vsel %vm508, %v502, %v519
    %v521 = vsel %vm507, %v518, %v520
    %v522 = vshll.u32 %v482, 8
    %v523 = vmul.u32.u64.compose %v522, %v521
    %v524 = vextract.low.u32 %v523
    %v525 = vextract.high.u32 %v523
    %v526 = vmul.u32.u64.compose %v522, %v517
    %v527 = vextract.low.u32 %v526
    %v528 = vextract.high.u32 %v526
    %v529 = vmul.u32 %v522, %v513
    %v530 = vadd.s32 %v525, %v527
    %vm531 = vc.u32 %v525, %v527
    %v532 = vadd.s32 %v528, 1
    %v533 = vsel %vm531, %v532, %v528
    %v534 = vadd.s32 %v529, %v533
    %v535 = vadd.s32 %v534, 536870912
    %v536 = vshrl.u32 %v535, 30
    %v537 = vshll.u32 %v536, 30
    %v538 = vsub.s32 %v534, %v537
    %vm539 = vcmp.lt.s32.totalorder %v538, 0
    %v540 = vsub.s32 0, %v538
    %v541 = vsel %vm539, %v540, %v538
    %v542 = vclz %v541
    %v543 = vsub.s32 %v542, 2
    %vm544 = vcmp.gt.s32.totalorder 0, %v543
    %v545 = vsel %vm544, 0, %v543
    %v546 = vsub.s32 32, %v545
    %v547 = vshll.u32 %v538, %v545
    %v548 = vshrl.u32 %v530, %v546
    %v549 = vor.u32 %v547, %v548
    %v550 = vsub.s32 4294967266, %v545
    %v551 = vadd.s32 %v550, 127
    %v552 = vshll.u32 %v551, 23
    %v553 = vor.u32 4788187, %v552
    %v554 = vand.u32 2147483647, %v553
    %v556 = vcvt.s32.f32 %v549
    %v557 = vmul.f32 %v556, %v554
    %v558 = vxor.u32 %v557, 2147483648
    %v559 = vsel %vm476, %v558, %v557
    %v560 = vsub.s32 4, %v536
    %v561 = vsel %vm476, %v560, %v536
    %v562 = vsel %vm475, %v364, %v559
    %v563 = vsel %vm475, 0, %v561
    %v564 = vcosq.f32.pop %v562
    %v565 = vsinq.f32.pop %v562
    %vm566 = vweird.f32 %v364
    %v567 = vand.u32 %v563, 3
    %vm568 = vcmp.lt.s32.totalorder %v567, 2
    %vm569 = vcmp.eq.s32.totalorder %v567, 0
    %v570 = vxor.u32 %v565, 2147483648
    %v571 = vsel %vm569, %v564, %v570
    %vm572 = vcmp.eq.s32.totalorder %v567, 2
    %v573 = vxor.u32 %v564, 2147483648
    %v574 = vsel %vm572, %v573, %v565
    %v575 = vsel %vm568, %v571, %v574
    %v576 = vsel %vm566, nan, %v575
    %v577 = vand.u32 2147483647, %v365
    %vm578 = vcmp.le.f32.partialorder %v577, 0.7853982
    %vm579 = vcmp.lt.s32.totalorder %v365, 0
    %v580 = vand.u32 %v365, 2139095040
    %v581 = vshrl.u32 %v580, 23
    %v582 = vsub.s32 %v581, 127
    %v583 = vand.u32 2147483647, %v365
    %v584 = vand.u32 %v583, 8388607
    %v585 = vor.u32 %v584, 8388608
    %v586 = vsub.s32 0, %v585
    %v587 = vadd.s32 %v582, 1
    %vm588 = vcmp.gt.s32.totalorder %v587, 0
    %v589 = vsel %vm588, %v587, 0
    %v590 = vshrl.u32 %v589, 5
    %v591 = vand.u32 %v589, 31
    %v592 = vsub.s32 32, %v591
    %v593 = vshrl.u32 683565275, %v592
    %v594 = vshll.u32 683565275, %v591
    %v595 = vshrl.u32 2475754826, %v592
    %v596 = vor.u32 %v594, %v595
    %v597 = vshll.u32 2475754826, %v591
    %v598 = vshrl.u32 2131351028, %v592
    %v599 = vor.u32 %v597, %v598
    %v600 = vshll.u32 2131351028, %v591
    %v601 = vshrl.u32 2102212464, %v592
    %v602 = vor.u32 %v600, %v601
    %v603 = vshll.u32 2102212464, %v591
    %v604 = vshrl.u32 920167782, %v592
    %v605 = vor.u32 %v603, %v604
    %v606 = vshll.u32 920167782, %v591
    %v607 = vshrl.u32 1326507024, %v592
    %v608 = vor.u32 %v606, %v607
    %vm609 = vcmp.lt.s32.totalorder %v590, 1
    %vm610 = vcmp.lt.s32.totalorder %v590, 2
    %vm611 = vcmp.lt.s32.totalorder %v590, 3
    %vm612 = vcmp.lt.s32.totalorder %v590, 4
    %v613 = vsel %vm609, %v593, %v596
    %v614 = vsel %vm612, %v602, 2102212464
    %v615 = vsel %vm611, %v599, %v614
    %v616 = vsel %vm610, %v613, %v615
    %v617 = vsel %vm609, %v596, %v599
    %v618 = vsel %vm612, %v605, 920167782
    %v619 = vsel %vm611, %v602, %v618
    %v620 = vsel %vm610, %v617, %v619
    %v621 = vsel %vm609, %v599, %v602
    %v622 = vsel %vm612, %v608, 1326507024
    %v623 = vsel %vm611, %v605, %v622
    %v624 = vsel %vm610, %v621, %v623
    %v625 = vshll.u32 %v585, 8
    %v626 = vmul.u32.u64.compose %v625, %v624
    %v627 = vextract.low.u32 %v626
    %v628 = vextract.high.u32 %v626
    %v629 = vmul.u32.u64.compose %v625, %v620
    %v630 = vextract.low.u32 %v629
    %v631 = vextract.high.u32 %v629
    %v632 = vmul.u32 %v625, %v616
    %v633 = vadd.s32 %v628, %v630
    %vm634 = vc.u32 %v628, %v630
    %v635 = vadd.s32 %v631, 1
    %v636 = vsel %vm634, %v635, %v631
    %v637 = vadd.s32 %v632, %v636
    %v638 = vadd.s32 %v637, 536870912
    %v639 = vshrl.u32 %v638, 30
    %v640 = vshll.u32 %v639, 30
    %v641 = vsub.s32 %v637, %v640
    %vm642 = vcmp.lt.s32.totalorder %v641, 0
    %v643 = vsub.s32 0, %v641
    %v644 = vsel %vm642, %v643, %v641
    %v645 = vclz %v644
    %v646 = vsub.s32 %v645, 2
    %vm647 = vcmp.gt.s32.totalorder 0, %v646
    %v648 = vsel %vm647, 0, %v646
    %v649 = vsub.s32 32, %v648
    %v650 = vshll.u32 %v641, %v648
    %v651 = vshrl.u32 %v633, %v649
    %v652 = vor.u32 %v650, %v651
    %v653 = vsub.s32 4294967266, %v648
    %v654 = vadd.s32 %v653, 127
    %v655 = vshll.u32 %v654, 23
    %v656 = vor.u32 4788187, %v655
    %v657 = vand.u32 2147483647, %v656
    %v659 = vcvt.s32.f32 %v652
    %v660 = vmul.f32 %v659, %v657
    %v661 = vxor.u32 %v660, 2147483648
    %v662 = vsel %vm579, %v661, %v660
    %v663 = vsub.s32 4, %v639
    %v664 = vsel %vm579, %v663, %v639
    %v665 = vsel %vm578, %v365, %v662
    %v666 = vsel %vm578, 0, %v664
    %v667 = vcosq.f32.pop %v665
    %v668 = vsinq.f32.pop %v665
    %vm669 = vweird.f32 %v365
    %v670 = vand.u32 %v666, 3
    %vm671 = vcmp.lt.s32.totalorder %v670, 2
    %vm672 = vcmp.eq.s32.totalorder %v670, 0
    %v673 = vxor.u32 %v668, 2147483648
    %v674 = vsel %vm672, %v667, %v673
    %vm675 = vcmp.eq.s32.totalorder %v670, 2
    %v676 = vxor.u32 %v667, 2147483648
    %v677 = vsel %vm675, %v676, %v668
    %v678 = vsel %vm671, %v674, %v677
    %v679 = vsel %vm669, nan, %v678
    %v680 = vand.u32 2147483647, %v366
    %vm681 = vcmp.le.f32.partialorder %v680, 0.7853982
    %vm682 = vcmp.lt.s32.totalorder %v366, 0
    %v683 = vand.u32 %v366, 2139095040
    %v684 = vshrl.u32 %v683, 23
    %v685 = vsub.s32 %v684, 127
    %v686 = vand.u32 2147483647, %v366
    %v687 = vand.u32 %v686, 8388607
    %v688 = vor.u32 %v687, 8388608
    %v689 = vsub.s32 0, %v688
    %v690 = vadd.s32 %v685, 1
    %vm691 = vcmp.gt.s32.totalorder %v690, 0
    %v692 = vsel %vm691, %v690, 0
    %v693 = vshrl.u32 %v692, 5
    %v694 = vand.u32 %v692, 31
    %v695 = vsub.s32 32, %v694
    %v696 = vshrl.u32 683565275, %v695
    %v697 = vshll.u32 683565275, %v694
    %v698 = vshrl.u32 2475754826, %v695
    %v699 = vor.u32 %v697, %v698
    %v700 = vshll.u32 2475754826, %v694
    %v701 = vshrl.u32 2131351028, %v695
    %v702 = vor.u32 %v700, %v701
    %v703 = vshll.u32 2131351028, %v694
    %v704 = vshrl.u32 2102212464, %v695
    %v705 = vor.u32 %v703, %v704
    %v706 = vshll.u32 2102212464, %v694
    %v707 = vshrl.u32 920167782, %v695
    %v708 = vor.u32 %v706, %v707
    %v709 = vshll.u32 920167782, %v694
    %v710 = vshrl.u32 1326507024, %v695
    %v711 = vor.u32 %v709, %v710
    %vm712 = vcmp.lt.s32.totalorder %v693, 1
    %vm713 = vcmp.lt.s32.totalorder %v693, 2
    %vm714 = vcmp.lt.s32.totalorder %v693, 3
    %vm715 = vcmp.lt.s32.totalorder %v693, 4
    %v716 = vsel %vm712, %v696, %v699
    %v717 = vsel %vm715, %v705, 2102212464
    %v718 = vsel %vm714, %v702, %v717
    %v719 = vsel %vm713, %v716, %v718
    %v720 = vsel %vm712, %v699, %v702
    %v721 = vsel %vm715, %v708, 920167782
    %v722 = vsel %vm714, %v705, %v721
    %v723 = vsel %vm713, %v720, %v722
    %v724 = vsel %vm712, %v702, %v705
    %v725 = vsel %vm715, %v711, 1326507024
    %v726 = vsel %vm714, %v708, %v725
    %v727 = vsel %vm713, %v724, %v726
    %v728 = vshll.u32 %v688, 8
    %v729 = vmul.u32.u64.compose %v728, %v727
    %v730 = vextract.low.u32 %v729
    %v731 = vextract.high.u32 %v729
    %v732 = vmul.u32.u64.compose %v728, %v723
    %v733 = vextract.low.u32 %v732
    %v734 = vextract.high.u32 %v732
    %v735 = vmul.u32 %v728, %v719
    %v736 = vadd.s32 %v731, %v733
    %vm737 = vc.u32 %v731, %v733
    %v738 = vadd.s32 %v734, 1
    %v739 = vsel %vm737, %v738, %v734
    %v740 = vadd.s32 %v735, %v739
    %v741 = vadd.s32 %v740, 536870912
    %v742 = vshrl.u32 %v741, 30
    %v743 = vshll.u32 %v742, 30
    %v744 = vsub.s32 %v740, %v743
    %vm745 = vcmp.lt.s32.totalorder %v744, 0
    %v746 = vsub.s32 0, %v744
    %v747 = vsel %vm745, %v746, %v744
    %v748 = vclz %v747
    %v749 = vsub.s32 %v748, 2
    %vm750 = vcmp.gt.s32.totalorder 0, %v749
    %v751 = vsel %vm750, 0, %v749
    %v752 = vsub.s32 32, %v751
    %v753 = vshll.u32 %v744, %v751
    %v754 = vshrl.u32 %v736, %v752
    %v755 = vor.u32 %v753, %v754
    %v756 = vsub.s32 4294967266, %v751
    %v757 = vadd.s32 %v756, 127
    %v758 = vshll.u32 %v757, 23
    %v759 = vor.u32 4788187, %v758
    %v760 = vand.u32 2147483647, %v759
    %v762 = vcvt.s32.f32 %v755
    %v763 = vmul.f32 %v762, %v760
    %v764 = vxor.u32 %v763, 2147483648
    %v765 = vsel %vm682, %v764, %v763
    %v766 = vsub.s32 4, %v742
    %v767 = vsel %vm682, %v766, %v742
    %v768 = vsel %vm681, %v366, %v765
    %v769 = vsel %vm681, 0, %v767
    %v770 = vcosq.f32.pop %v768
    %v771 = vsinq.f32.pop %v768
    %vm772 = vweird.f32 %v366
    %v773 = vand.u32 %v769, 3
    %vm774 = vcmp.lt.s32.totalorder %v773, 2
    %vm775 = vcmp.eq.s32.totalorder %v773, 0
    %v776 = vxor.u32 %v771, 2147483648
    %v777 = vsel %vm775, %v770, %v776
    %vm778 = vcmp.eq.s32.totalorder %v773, 2
    %v779 = vxor.u32 %v770, 2147483648
    %v780 = vsel %vm778, %v779, %v771
    %v781 = vsel %vm774, %v777, %v780
    %v782 = vsel %vm772, nan, %v781
    %v783 = vand.u32 2147483647, %v367
    %vm784 = vcmp.le.f32.partialorder %v783, 0.7853982
    %vm785 = vcmp.lt.s32.totalorder %v367, 0
    %v786 = vand.u32 %v367, 2139095040
    %v787 = vshrl.u32 %v786, 23
    %v788 = vsub.s32 %v787, 127
    %v789 = vand.u32 2147483647, %v367
    %v790 = vand.u32 %v789, 8388607
    %v791 = vor.u32 %v790, 8388608
    %v792 = vsub.s32 0, %v791
    %v793 = vadd.s32 %v788, 1
    %vm794 = vcmp.gt.s32.totalorder %v793, 0
    %v795 = vsel %vm794, %v793, 0
    %v796 = vshrl.u32 %v795, 5
    %v797 = vand.u32 %v795, 31
    %v798 = vsub.s32 32, %v797
    %v799 = vshrl.u32 683565275, %v798
    %v800 = vshll.u32 683565275, %v797
    %v801 = vshrl.u32 2475754826, %v798
    %v802 = vor.u32 %v800, %v801
    %v803 = vshll.u32 2475754826, %v797
    %v804 = vshrl.u32 2131351028, %v798
    %v805 = vor.u32 %v803, %v804
    %v806 = vshll.u32 2131351028, %v797
    %v807 = vshrl.u32 2102212464, %v798
    %v808 = vor.u32 %v806, %v807
    %v809 = vshll.u32 2102212464, %v797
    %v810 = vshrl.u32 920167782, %v798
    %v811 = vor.u32 %v809, %v810
    %v812 = vshll.u32 920167782, %v797
    %v813 = vshrl.u32 1326507024, %v798
    %v814 = vor.u32 %v812, %v813
    %vm815 = vcmp.lt.s32.totalorder %v796, 1
    %vm816 = vcmp.lt.s32.totalorder %v796, 2
    %vm817 = vcmp.lt.s32.totalorder %v796, 3
    %vm818 = vcmp.lt.s32.totalorder %v796, 4
    %v819 = vsel %vm815, %v799, %v802
    %v820 = vsel %vm818, %v808, 2102212464
    %v821 = vsel %vm817, %v805, %v820
    %v822 = vsel %vm816, %v819, %v821
    %v823 = vsel %vm815, %v802, %v805
    %v824 = vsel %vm818, %v811, 920167782
    %v825 = vsel %vm817, %v808, %v824
    %v826 = vsel %vm816, %v823, %v825
    %v827 = vsel %vm815, %v805, %v808
    %v828 = vsel %vm818, %v814, 1326507024
    %v829 = vsel %vm817, %v811, %v828
    %v830 = vsel %vm816, %v827, %v829
    %v831 = vshll.u32 %v791, 8
    %v832 = vmul.u32.u64.compose %v831, %v830
    %v833 = vextract.low.u32 %v832
    %v834 = vextract.high.u32 %v832
    %v835 = vmul.u32.u64.compose %v831, %v826
    %v836 = vextract.low.u32 %v835
    %v837 = vextract.high.u32 %v835
    %v838 = vmul.u32 %v831, %v822
    %v839 = vadd.s32 %v834, %v836
    %vm840 = vc.u32 %v834, %v836
    %v841 = vadd.s32 %v837, 1
    %v842 = vsel %vm840, %v841, %v837
    %v843 = vadd.s32 %v838, %v842
    %v844 = vadd.s32 %v843, 536870912
    %v845 = vshrl.u32 %v844, 30
    %v846 = vshll.u32 %v845, 30
    %v847 = vsub.s32 %v843, %v846
    %vm848 = vcmp.lt.s32.totalorder %v847, 0
    %v849 = vsub.s32 0, %v847
    %v850 = vsel %vm848, %v849, %v847
    %v851 = vclz %v850
    %v852 = vsub.s32 %v851, 2
    %vm853 = vcmp.gt.s32.totalorder 0, %v852
    %v854 = vsel %vm853, 0, %v852
    %v855 = vsub.s32 32, %v854
    %v856 = vshll.u32 %v847, %v854
    %v857 = vshrl.u32 %v839, %v855
    %v858 = vor.u32 %v856, %v857
    %v859 = vsub.s32 4294967266, %v854
    %v860 = vadd.s32 %v859, 127
    %v861 = vshll.u32 %v860, 23
    %v862 = vor.u32 4788187, %v861
    %v863 = vand.u32 2147483647, %v862
    %v865 = vcvt.s32.f32 %v858
    %v866 = vmul.f32 %v865, %v863
    %v867 = vxor.u32 %v866, 2147483648
    %v868 = vsel %vm785, %v867, %v866
    %v869 = vsub.s32 4, %v845
    %v870 = vsel %vm785, %v869, %v845
    %v871 = vsel %vm784, %v367, %v868
    %v872 = vsel %vm784, 0, %v870
    %v873 = vcosq.f32.pop %v871
    %v874 = vsinq.f32.pop %v871
    %vm875 = vweird.f32 %v367
    %v876 = vand.u32 %v872, 3
    %vm877 = vcmp.lt.s32.totalorder %v876, 2
    %vm878 = vcmp.eq.s32.totalorder %v876, 0
    %v879 = vxor.u32 %v874, 2147483648
    %v880 = vsel %vm878, %v873, %v879
    %vm881 = vcmp.eq.s32.totalorder %v876, 2
    %v882 = vxor.u32 %v873, 2147483648
    %v883 = vsel %vm881, %v882, %v874
    %v884 = vsel %vm877, %v880, %v883
    %v885 = vsel %vm875, nan, %v884
    %v886 = vand.u32 2147483647, %v368
    %vm887 = vcmp.le.f32.partialorder %v886, 0.7853982
    %vm888 = vcmp.lt.s32.totalorder %v368, 0
    %v889 = vand.u32 %v368, 2139095040
    %v890 = vshrl.u32 %v889, 23
    %v891 = vsub.s32 %v890, 127
    %v892 = vand.u32 2147483647, %v368
    %v893 = vand.u32 %v892, 8388607
    %v894 = vor.u32 %v893, 8388608
    %v895 = vsub.s32 0, %v894
    %v896 = vadd.s32 %v891, 1
    %vm897 = vcmp.gt.s32.totalorder %v896, 0
    %v898 = vsel %vm897, %v896, 0
    %v899 = vshrl.u32 %v898, 5
    %v900 = vand.u32 %v898, 31
    %v901 = vsub.s32 32, %v900
    %v902 = vshrl.u32 683565275, %v901
    %v903 = vshll.u32 683565275, %v900
    %v904 = vshrl.u32 2475754826, %v901
    %v905 = vor.u32 %v903, %v904
    %v906 = vshll.u32 2475754826, %v900
    %v907 = vshrl.u32 2131351028, %v901
    %v908 = vor.u32 %v906, %v907
    %v909 = vshll.u32 2131351028, %v900
    %v910 = vshrl.u32 2102212464, %v901
    %v911 = vor.u32 %v909, %v910
    %v912 = vshll.u32 2102212464, %v900
    %v913 = vshrl.u32 920167782, %v901
    %v914 = vor.u32 %v912, %v913
    %v915 = vshll.u32 920167782, %v900
    %v916 = vshrl.u32 1326507024, %v901
    %v917 = vor.u32 %v915, %v916
    %vm918 = vcmp.lt.s32.totalorder %v899, 1
    %vm919 = vcmp.lt.s32.totalorder %v899, 2
    %vm920 = vcmp.lt.s32.totalorder %v899, 3
    %vm921 = vcmp.lt.s32.totalorder %v899, 4
    %v922 = vsel %vm918, %v902, %v905
    %v923 = vsel %vm921, %v911, 2102212464
    %v924 = vsel %vm920, %v908, %v923
    %v925 = vsel %vm919, %v922, %v924
    %v926 = vsel %vm918, %v905, %v908
    %v927 = vsel %vm921, %v914, 920167782
    %v928 = vsel %vm920, %v911, %v927
    %v929 = vsel %vm919, %v926, %v928
    %v930 = vsel %vm918, %v908, %v911
    %v931 = vsel %vm921, %v917, 1326507024
    %v932 = vsel %vm920, %v914, %v931
    %v933 = vsel %vm919, %v930, %v932
    %v934 = vshll.u32 %v894, 8
    %v935 = vmul.u32.u64.compose %v934, %v933
    %v936 = vextract.low.u32 %v935
    %v937 = vextract.high.u32 %v935
    %v938 = vmul.u32.u64.compose %v934, %v929
    %v939 = vextract.low.u32 %v938
    %v940 = vextract.high.u32 %v938
    %v941 = vmul.u32 %v934, %v925
    %v942 = vadd.s32 %v937, %v939
    %vm943 = vc.u32 %v937, %v939
    %v944 = vadd.s32 %v940, 1
    %v945 = vsel %vm943, %v944, %v940
    %v946 = vadd.s32 %v941, %v945
    %v947 = vadd.s32 %v946, 536870912
    %v948 = vshrl.u32 %v947, 30
    %v949 = vshll.u32 %v948, 30
    %v950 = vsub.s32 %v946, %v949
    %vm951 = vcmp.lt.s32.totalorder %v950, 0
    %v952 = vsub.s32 0, %v950
    %v953 = vsel %vm951, %v952, %v950
    %v954 = vclz %v953
    %v955 = vsub.s32 %v954, 2
    %vm956 = vcmp.gt.s32.totalorder 0, %v955
    %v957 = vsel %vm956, 0, %v955
    %v958 = vsub.s32 32, %v957
    %v959 = vshll.u32 %v950, %v957
    %v960 = vshrl.u32 %v942, %v958
    %v961 = vor.u32 %v959, %v960
    %v962 = vsub.s32 4294967266, %v957
    %v963 = vadd.s32 %v962, 127
    %v964 = vshll.u32 %v963, 23
    %v965 = vor.u32 4788187, %v964
    %v966 = vand.u32 2147483647, %v965
    %v968 = vcvt.s32.f32 %v961
    %v969 = vmul.f32 %v968, %v966
    %v970 = vxor.u32 %v969, 2147483648
    %v971 = vsel %vm888, %v970, %v969
    %v972 = vsub.s32 4, %v948
    %v973 = vsel %vm888, %v972, %v948
    %v974 = vsel %vm887, %v368, %v971
    %v975 = vsel %vm887, 0, %v973
    %v976 = vcosq.f32.pop %v974
    %v977 = vsinq.f32.pop %v974
    %vm978 = vweird.f32 %v368
    %v979 = vand.u32 %v975, 3
    %vm980 = vcmp.lt.s32.totalorder %v979, 2
    %vm981 = vcmp.eq.s32.totalorder %v979, 0
    %v982 = vxor.u32 %v977, 2147483648
    %v983 = vsel %vm981, %v976, %v982
    %vm984 = vcmp.eq.s32.totalorder %v979, 2
    %v985 = vxor.u32 %v976, 2147483648
    %v986 = vsel %vm984, %v985, %v977
    %v987 = vsel %vm980, %v983, %v986
    %v988 = vsel %vm978, nan, %v987
    %v989 = vand.u32 2147483647, %v369
    %vm990 = vcmp.le.f32.partialorder %v989, 0.7853982
    %vm991 = vcmp.lt.s32.totalorder %v369, 0
    %v992 = vand.u32 %v369, 2139095040
    %v993 = vshrl.u32 %v992, 23
    %v994 = vsub.s32 %v993, 127
    %v995 = vand.u32 2147483647, %v369
    %v996 = vand.u32 %v995, 8388607
    %v997 = vor.u32 %v996, 8388608
    %v998 = vsub.s32 0, %v997
    %v999 = vadd.s32 %v994, 1
    %vm1000 = vcmp.gt.s32.totalorder %v999, 0
    %v1001 = vsel %vm1000, %v999, 0
    %v1002 = vshrl.u32 %v1001, 5
    %v1003 = vand.u32 %v1001, 31
    %v1004 = vsub.s32 32, %v1003
    %v1005 = vshrl.u32 683565275, %v1004
    %v1006 = vshll.u32 683565275, %v1003
    %v1007 = vshrl.u32 2475754826, %v1004
    %v1008 = vor.u32 %v1006, %v1007
    %v1009 = vshll.u32 2475754826, %v1003
    %v1010 = vshrl.u32 2131351028, %v1004
    %v1011 = vor.u32 %v1009, %v1010
    %v1012 = vshll.u32 2131351028, %v1003
    %v1013 = vshrl.u32 2102212464, %v1004
    %v1014 = vor.u32 %v1012, %v1013
    %v1015 = vshll.u32 2102212464, %v1003
    %v1016 = vshrl.u32 920167782, %v1004
    %v1017 = vor.u32 %v1015, %v1016
    %v1018 = vshll.u32 920167782, %v1003
    %v1019 = vshrl.u32 1326507024, %v1004
    %v1020 = vor.u32 %v1018, %v1019
    %vm1021 = vcmp.lt.s32.totalorder %v1002, 1
    %vm1022 = vcmp.lt.s32.totalorder %v1002, 2
    %vm1023 = vcmp.lt.s32.totalorder %v1002, 3
    %vm1024 = vcmp.lt.s32.totalorder %v1002, 4
    %v1025 = vsel %vm1021, %v1005, %v1008
    %v1026 = vsel %vm1024, %v1014, 2102212464
    %v1027 = vsel %vm1023, %v1011, %v1026
    %v1028 = vsel %vm1022, %v1025, %v1027
    %v1029 = vsel %vm1021, %v1008, %v1011
    %v1030 = vsel %vm1024, %v1017, 920167782
    %v1031 = vsel %vm1023, %v1014, %v1030
    %v1032 = vsel %vm1022, %v1029, %v1031
    %v1033 = vsel %vm1021, %v1011, %v1014
    %v1034 = vsel %vm1024, %v1020, 1326507024
    %v1035 = vsel %vm1023, %v1017, %v1034
    %v1036 = vsel %vm1022, %v1033, %v1035
    %v1037 = vshll.u32 %v997, 8
    %v1038 = vmul.u32.u64.compose %v1037, %v1036
    %v1039 = vextract.low.u32 %v1038
    %v1040 = vextract.high.u32 %v1038
    %v1041 = vmul.u32.u64.compose %v1037, %v1032
    %v1042 = vextract.low.u32 %v1041
    %v1043 = vextract.high.u32 %v1041
    %v1044 = vmul.u32 %v1037, %v1028
    %v1045 = vadd.s32 %v1040, %v1042
    %vm1046 = vc.u32 %v1040, %v1042
    %v1047 = vadd.s32 %v1043, 1
    %v1048 = vsel %vm1046, %v1047, %v1043
    %v1049 = vadd.s32 %v1044, %v1048
    %v1050 = vadd.s32 %v1049, 536870912
    %v1051 = vshrl.u32 %v1050, 30
    %v1052 = vshll.u32 %v1051, 30
    %v1053 = vsub.s32 %v1049, %v1052
    %vm1054 = vcmp.lt.s32.totalorder %v1053, 0
    %v1055 = vsub.s32 0, %v1053
    %v1056 = vsel %vm1054, %v1055, %v1053
    %v1057 = vclz %v1056
    %v1058 = vsub.s32 %v1057, 2
    %vm1059 = vcmp.gt.s32.totalorder 0, %v1058
    %v1060 = vsel %vm1059, 0, %v1058
    %v1061 = vsub.s32 32, %v1060
    %v1062 = vshll.u32 %v1053, %v1060
    %v1063 = vshrl.u32 %v1045, %v1061
    %v1064 = vor.u32 %v1062, %v1063
    %v1065 = vsub.s32 4294967266, %v1060
    %v1066 = vadd.s32 %v1065, 127
    %v1067 = vshll.u32 %v1066, 23
    %v1068 = vor.u32 4788187, %v1067
    %v1069 = vand.u32 2147483647, %v1068
    %v1071 = vcvt.s32.f32 %v1064
    %v1072 = vmul.f32 %v1071, %v1069
    %v1073 = vxor.u32 %v1072, 2147483648
    %v1074 = vsel %vm991, %v1073, %v1072
    %v1075 = vsub.s32 4, %v1051
    %v1076 = vsel %vm991, %v1075, %v1051
    %v1077 = vsel %vm990, %v369, %v1074
    %v1078 = vsel %vm990, 0, %v1076
    %v1079 = vcosq.f32.pop %v1077
    %v1080 = vsinq.f32.pop %v1077
    %vm1081 = vweird.f32 %v369
    %v1082 = vand.u32 %v1078, 3
    %vm1083 = vcmp.lt.s32.totalorder %v1082, 2
    %vm1084 = vcmp.eq.s32.totalorder %v1082, 0
    %v1085 = vxor.u32 %v1080, 2147483648
    %v1086 = vsel %vm1084, %v1079, %v1085
    %vm1087 = vcmp.eq.s32.totalorder %v1082, 2
    %v1088 = vxor.u32 %v1079, 2147483648
    %v1089 = vsel %vm1087, %v1088, %v1080
    %v1090 = vsel %vm1083, %v1086, %v1089
    %v1091 = vsel %vm1081, nan, %v1090
    %v1092 = vand.u32 2147483647, %v370
    %vm1093 = vcmp.le.f32.partialorder %v1092, 0.7853982
    %vm1094 = vcmp.lt.s32.totalorder %v370, 0
    %v1095 = vand.u32 %v370, 2139095040
    %v1096 = vshrl.u32 %v1095, 23
    %v1097 = vsub.s32 %v1096, 127
    %v1098 = vand.u32 2147483647, %v370
    %v1099 = vand.u32 %v1098, 8388607
    %v1100 = vor.u32 %v1099, 8388608
    %v1101 = vsub.s32 0, %v1100
    %v1102 = vadd.s32 %v1097, 1
    %vm1103 = vcmp.gt.s32.totalorder %v1102, 0
    %v1104 = vsel %vm1103, %v1102, 0
    %v1105 = vshrl.u32 %v1104, 5
    %v1106 = vand.u32 %v1104, 31
    %v1107 = vsub.s32 32, %v1106
    %v1108 = vshrl.u32 683565275, %v1107
    %v1109 = vshll.u32 683565275, %v1106
    %v1110 = vshrl.u32 2475754826, %v1107
    %v1111 = vor.u32 %v1109, %v1110
    %v1112 = vshll.u32 2475754826, %v1106
    %v1113 = vshrl.u32 2131351028, %v1107
    %v1114 = vor.u32 %v1112, %v1113
    %v1115 = vshll.u32 2131351028, %v1106
    %v1116 = vshrl.u32 2102212464, %v1107
    %v1117 = vor.u32 %v1115, %v1116
    %v1118 = vshll.u32 2102212464, %v1106
    %v1119 = vshrl.u32 920167782, %v1107
    %v1120 = vor.u32 %v1118, %v1119
    %v1121 = vshll.u32 920167782, %v1106
    %v1122 = vshrl.u32 1326507024, %v1107
    %v1123 = vor.u32 %v1121, %v1122
    %vm1124 = vcmp.lt.s32.totalorder %v1105, 1
    %vm1125 = vcmp.lt.s32.totalorder %v1105, 2
    %vm1126 = vcmp.lt.s32.totalorder %v1105, 3
    %vm1127 = vcmp.lt.s32.totalorder %v1105, 4
    %v1128 = vsel %vm1124, %v1108, %v1111
    %v1129 = vsel %vm1127, %v1117, 2102212464
    %v1130 = vsel %vm1126, %v1114, %v1129
    %v1131 = vsel %vm1125, %v1128, %v1130
    %v1132 = vsel %vm1124, %v1111, %v1114
    %v1133 = vsel %vm1127, %v1120, 920167782
    %v1134 = vsel %vm1126, %v1117, %v1133
    %v1135 = vsel %vm1125, %v1132, %v1134
    %v1136 = vsel %vm1124, %v1114, %v1117
    %v1137 = vsel %vm1127, %v1123, 1326507024
    %v1138 = vsel %vm1126, %v1120, %v1137
    %v1139 = vsel %vm1125, %v1136, %v1138
    %v1140 = vshll.u32 %v1100, 8
    %v1141 = vmul.u32.u64.compose %v1140, %v1139
    %v1142 = vextract.low.u32 %v1141
    %v1143 = vextract.high.u32 %v1141
    %v1144 = vmul.u32.u64.compose %v1140, %v1135
    %v1145 = vextract.low.u32 %v1144
    %v1146 = vextract.high.u32 %v1144
    %v1147 = vmul.u32 %v1140, %v1131
    %v1148 = vadd.s32 %v1143, %v1145
    %vm1149 = vc.u32 %v1143, %v1145
    %v1150 = vadd.s32 %v1146, 1
    %v1151 = vsel %vm1149, %v1150, %v1146
    %v1152 = vadd.s32 %v1147, %v1151
    %v1153 = vadd.s32 %v1152, 536870912
    %v1154 = vshrl.u32 %v1153, 30
    %v1155 = vshll.u32 %v1154, 30
    %v1156 = vsub.s32 %v1152, %v1155
    %vm1157 = vcmp.lt.s32.totalorder %v1156, 0
    %v1158 = vsub.s32 0, %v1156
    %v1159 = vsel %vm1157, %v1158, %v1156
    %v1160 = vclz %v1159
    %v1161 = vsub.s32 %v1160, 2
    %vm1162 = vcmp.gt.s32.totalorder 0, %v1161
    %v1163 = vsel %vm1162, 0, %v1161
    %v1164 = vsub.s32 32, %v1163
    %v1165 = vshll.u32 %v1156, %v1163
    %v1166 = vshrl.u32 %v1148, %v1164
    %v1167 = vor.u32 %v1165, %v1166
    %v1168 = vsub.s32 4294967266, %v1163
    %v1169 = vadd.s32 %v1168, 127
    %v1170 = vshll.u32 %v1169, 23
    %v1171 = vor.u32 4788187, %v1170
    %v1172 = vand.u32 2147483647, %v1171
    %v1174 = vcvt.s32.f32 %v1167
    %v1175 = vmul.f32 %v1174, %v1172
    %v1176 = vxor.u32 %v1175, 2147483648
    %v1177 = vsel %vm1094, %v1176, %v1175
    %v1178 = vsub.s32 4, %v1154
    %v1179 = vsel %vm1094, %v1178, %v1154
    %v1180 = vsel %vm1093, %v370, %v1177
    %v1181 = vsel %vm1093, 0, %v1179
    %v1182 = vcosq.f32.pop %v1180
    %v1183 = vsinq.f32.pop %v1180
    %vm1184 = vweird.f32 %v370
    %v1185 = vand.u32 %v1181, 3
    %vm1186 = vcmp.lt.s32.totalorder %v1185, 2
    %vm1187 = vcmp.eq.s32.totalorder %v1185, 0
    %v1188 = vxor.u32 %v1183, 2147483648
    %v1189 = vsel %vm1187, %v1182, %v1188
    %vm1190 = vcmp.eq.s32.totalorder %v1185, 2
    %v1191 = vxor.u32 %v1182, 2147483648
    %v1192 = vsel %vm1190, %v1191, %v1183
    %v1193 = vsel %vm1186, %v1189, %v1192
    %v1194 = vsel %vm1184, nan, %v1193
    %v1195 = vmul.f32 %v355, %v473
    %v1196 = vmul.f32 %v356, %v576
    %v1197 = vmul.f32 %v357, %v679
    %v1198 = vmul.f32 %v358, %v782
    %v1199 = vmul.f32 %v359, %v885
    %v1200 = vmul.f32 %v360, %v988
    %v1201 = vmul.f32 %v361, %v1091
    %v1202 = vmul.f32 %v362, %v1194
    %v1203 = vand.u32 2147483647, %v363
    %vm1204 = vcmp.le.f32.partialorder %v1203, 0.7853982
    %vm1205 = vcmp.lt.s32.totalorder %v363, 0
    %v1206 = vand.u32 %v363, 2139095040
    %v1207 = vshrl.u32 %v1206, 23
    %v1208 = vsub.s32 %v1207, 127
    %v1209 = vand.u32 2147483647, %v363
    %v1210 = vand.u32 %v1209, 8388607
    %v1211 = vor.u32 %v1210, 8388608
    %v1212 = vsub.s32 0, %v1211
    %v1213 = vadd.s32 %v1208, 1
    %vm1214 = vcmp.gt.s32.totalorder %v1213, 0
    %v1215 = vsel %vm1214, %v1213, 0
    %v1216 = vshrl.u32 %v1215, 5
    %v1217 = vand.u32 %v1215, 31
    %v1218 = vsub.s32 32, %v1217
    %v1219 = vshrl.u32 683565275, %v1218
    %v1220 = vshll.u32 683565275, %v1217
    %v1221 = vshrl.u32 2475754826, %v1218
    %v1222 = vor.u32 %v1220, %v1221
    %v1223 = vshll.u32 2475754826, %v1217
    %v1224 = vshrl.u32 2131351028, %v1218
    %v1225 = vor.u32 %v1223, %v1224
    %v1226 = vshll.u32 2131351028, %v1217
    %v1227 = vshrl.u32 2102212464, %v1218
    %v1228 = vor.u32 %v1226, %v1227
    %v1229 = vshll.u32 2102212464, %v1217
    %v1230 = vshrl.u32 920167782, %v1218
    %v1231 = vor.u32 %v1229, %v1230
    %v1232 = vshll.u32 920167782, %v1217
    %v1233 = vshrl.u32 1326507024, %v1218
    %v1234 = vor.u32 %v1232, %v1233
    %vm1235 = vcmp.lt.s32.totalorder %v1216, 1
    %vm1236 = vcmp.lt.s32.totalorder %v1216, 2
    %vm1237 = vcmp.lt.s32.totalorder %v1216, 3
    %vm1238 = vcmp.lt.s32.totalorder %v1216, 4
    %v1239 = vsel %vm1235, %v1219, %v1222
    %v1240 = vsel %vm1238, %v1228, 2102212464
    %v1241 = vsel %vm1237, %v1225, %v1240
    %v1242 = vsel %vm1236, %v1239, %v1241
    %v1243 = vsel %vm1235, %v1222, %v1225
    %v1244 = vsel %vm1238, %v1231, 920167782
    %v1245 = vsel %vm1237, %v1228, %v1244
    %v1246 = vsel %vm1236, %v1243, %v1245
    %v1247 = vsel %vm1235, %v1225, %v1228
    %v1248 = vsel %vm1238, %v1234, 1326507024
    %v1249 = vsel %vm1237, %v1231, %v1248
    %v1250 = vsel %vm1236, %v1247, %v1249
    %v1251 = vshll.u32 %v1211, 8
    %v1252 = vmul.u32.u64.compose %v1251, %v1250
    %v1253 = vextract.low.u32 %v1252
    %v1254 = vextract.high.u32 %v1252
    %v1255 = vmul.u32.u64.compose %v1251, %v1246
    %v1256 = vextract.low.u32 %v1255
    %v1257 = vextract.high.u32 %v1255
    %v1258 = vmul.u32 %v1251, %v1242
    %v1259 = vadd.s32 %v1254, %v1256
    %vm1260 = vc.u32 %v1254, %v1256
    %v1261 = vadd.s32 %v1257, 1
    %v1262 = vsel %vm1260, %v1261, %v1257
    %v1263 = vadd.s32 %v1258, %v1262
    %v1264 = vadd.s32 %v1263, 536870912
    %v1265 = vshrl.u32 %v1264, 30
    %v1266 = vshll.u32 %v1265, 30
    %v1267 = vsub.s32 %v1263, %v1266
    %vm1268 = vcmp.lt.s32.totalorder %v1267, 0
    %v1269 = vsub.s32 0, %v1267
    %v1270 = vsel %vm1268, %v1269, %v1267
    %v1271 = vclz %v1270
    %v1272 = vsub.s32 %v1271, 2
    %vm1273 = vcmp.gt.s32.totalorder 0, %v1272
    %v1274 = vsel %vm1273, 0, %v1272
    %v1275 = vsub.s32 32, %v1274
    %v1276 = vshll.u32 %v1267, %v1274
    %v1277 = vshrl.u32 %v1259, %v1275
    %v1278 = vor.u32 %v1276, %v1277
    %v1279 = vsub.s32 4294967266, %v1274
    %v1280 = vadd.s32 %v1279, 127
    %v1281 = vshll.u32 %v1280, 23
    %v1282 = vor.u32 4788187, %v1281
    %v1283 = vand.u32 2147483647, %v1282
    %v1285 = vcvt.s32.f32 %v1278
    %v1286 = vmul.f32 %v1285, %v1283
    %v1287 = vxor.u32 %v1286, 2147483648
    %v1288 = vsel %vm1205, %v1287, %v1286
    %v1289 = vsub.s32 4, %v1265
    %v1290 = vsel %vm1205, %v1289, %v1265
    %v1291 = vsel %vm1204, %v363, %v1288
    %v1292 = vsel %vm1204, 0, %v1290
    %v1293 = vcosq.f32.pop %v1291
    %v1294 = vsinq.f32.pop %v1291
    %vm1295 = vweird.f32 %v363
    %v1296 = vadd.s32 %v1292, 3
    %v1297 = vand.u32 %v1296, 3
    %vm1298 = vcmp.lt.s32.totalorder %v1297, 2
    %vm1299 = vcmp.eq.s32.totalorder %v1297, 0
    %v1300 = vxor.u32 %v1294, 2147483648
    %v1301 = vsel %vm1299, %v1293, %v1300
    %vm1302 = vcmp.eq.s32.totalorder %v1297, 2
    %v1303 = vxor.u32 %v1293, 2147483648
    %v1304 = vsel %vm1302, %v1303, %v1294
    %v1305 = vsel %vm1298, %v1301, %v1304
    %v1306 = vsel %vm1295, nan, %v1305
    %v1307 = vand.u32 2147483647, %v364
    %vm1308 = vcmp.le.f32.partialorder %v1307, 0.7853982
    %vm1309 = vcmp.lt.s32.totalorder %v364, 0
    %v1310 = vand.u32 %v364, 2139095040
    %v1311 = vshrl.u32 %v1310, 23
    %v1312 = vsub.s32 %v1311, 127
    %v1313 = vand.u32 2147483647, %v364
    %v1314 = vand.u32 %v1313, 8388607
    %v1315 = vor.u32 %v1314, 8388608
    %v1316 = vsub.s32 0, %v1315
    %v1317 = vadd.s32 %v1312, 1
    %vm1318 = vcmp.gt.s32.totalorder %v1317, 0
    %v1319 = vsel %vm1318, %v1317, 0
    %v1320 = vshrl.u32 %v1319, 5
    %v1321 = vand.u32 %v1319, 31
    %v1322 = vsub.s32 32, %v1321
    %v1323 = vshrl.u32 683565275, %v1322
    %v1324 = vshll.u32 683565275, %v1321
    %v1325 = vshrl.u32 2475754826, %v1322
    %v1326 = vor.u32 %v1324, %v1325
    %v1327 = vshll.u32 2475754826, %v1321
    %v1328 = vshrl.u32 2131351028, %v1322
    %v1329 = vor.u32 %v1327, %v1328
    %v1330 = vshll.u32 2131351028, %v1321
    %v1331 = vshrl.u32 2102212464, %v1322
    %v1332 = vor.u32 %v1330, %v1331
    %v1333 = vshll.u32 2102212464, %v1321
    %v1334 = vshrl.u32 920167782, %v1322
    %v1335 = vor.u32 %v1333, %v1334
    %v1336 = vshll.u32 920167782, %v1321
    %v1337 = vshrl.u32 1326507024, %v1322
    %v1338 = vor.u32 %v1336, %v1337
    %vm1339 = vcmp.lt.s32.totalorder %v1320, 1
    %vm1340 = vcmp.lt.s32.totalorder %v1320, 2
    %vm1341 = vcmp.lt.s32.totalorder %v1320, 3
    %vm1342 = vcmp.lt.s32.totalorder %v1320, 4
    %v1343 = vsel %vm1339, %v1323, %v1326
    %v1344 = vsel %vm1342, %v1332, 2102212464
    %v1345 = vsel %vm1341, %v1329, %v1344
    %v1346 = vsel %vm1340, %v1343, %v1345
    %v1347 = vsel %vm1339, %v1326, %v1329
    %v1348 = vsel %vm1342, %v1335, 920167782
    %v1349 = vsel %vm1341, %v1332, %v1348
    %v1350 = vsel %vm1340, %v1347, %v1349
    %v1351 = vsel %vm1339, %v1329, %v1332
    %v1352 = vsel %vm1342, %v1338, 1326507024
    %v1353 = vsel %vm1341, %v1335, %v1352
    %v1354 = vsel %vm1340, %v1351, %v1353
    %v1355 = vshll.u32 %v1315, 8
    %v1356 = vmul.u32.u64.compose %v1355, %v1354
    %v1357 = vextract.low.u32 %v1356
    %v1358 = vextract.high.u32 %v1356
    %v1359 = vmul.u32.u64.compose %v1355, %v1350
    %v1360 = vextract.low.u32 %v1359
    %v1361 = vextract.high.u32 %v1359
    %v1362 = vmul.u32 %v1355, %v1346
    %v1363 = vadd.s32 %v1358, %v1360
    %vm1364 = vc.u32 %v1358, %v1360
    %v1365 = vadd.s32 %v1361, 1
    %v1366 = vsel %vm1364, %v1365, %v1361
    %v1367 = vadd.s32 %v1362, %v1366
    %v1368 = vadd.s32 %v1367, 536870912
    %v1369 = vshrl.u32 %v1368, 30
    %v1370 = vshll.u32 %v1369, 30
    %v1371 = vsub.s32 %v1367, %v1370
    %vm1372 = vcmp.lt.s32.totalorder %v1371, 0
    %v1373 = vsub.s32 0, %v1371
    %v1374 = vsel %vm1372, %v1373, %v1371
    %v1375 = vclz %v1374
    %v1376 = vsub.s32 %v1375, 2
    %vm1377 = vcmp.gt.s32.totalorder 0, %v1376
    %v1378 = vsel %vm1377, 0, %v1376
    %v1379 = vsub.s32 32, %v1378
    %v1380 = vshll.u32 %v1371, %v1378
    %v1381 = vshrl.u32 %v1363, %v1379
    %v1382 = vor.u32 %v1380, %v1381
    %v1383 = vsub.s32 4294967266, %v1378
    %v1384 = vadd.s32 %v1383, 127
    %v1385 = vshll.u32 %v1384, 23
    %v1386 = vor.u32 4788187, %v1385
    %v1387 = vand.u32 2147483647, %v1386
    %v1389 = vcvt.s32.f32 %v1382
    %v1390 = vmul.f32 %v1389, %v1387
    %v1391 = vxor.u32 %v1390, 2147483648
    %v1392 = vsel %vm1309, %v1391, %v1390
    %v1393 = vsub.s32 4, %v1369
    %v1394 = vsel %vm1309, %v1393, %v1369
    %v1395 = vsel %vm1308, %v364, %v1392
    %v1396 = vsel %vm1308, 0, %v1394
    %v1397 = vcosq.f32.pop %v1395
    %v1398 = vsinq.f32.pop %v1395
    %vm1399 = vweird.f32 %v364
    %v1400 = vadd.s32 %v1396, 3
    %v1401 = vand.u32 %v1400, 3
    %vm1402 = vcmp.lt.s32.totalorder %v1401, 2
    %vm1403 = vcmp.eq.s32.totalorder %v1401, 0
    %v1404 = vxor.u32 %v1398, 2147483648
    %v1405 = vsel %vm1403, %v1397, %v1404
    %vm1406 = vcmp.eq.s32.totalorder %v1401, 2
    %v1407 = vxor.u32 %v1397, 2147483648
    %v1408 = vsel %vm1406, %v1407, %v1398
    %v1409 = vsel %vm1402, %v1405, %v1408
    %v1410 = vsel %vm1399, nan, %v1409
    %v1411 = vand.u32 2147483647, %v365
    %vm1412 = vcmp.le.f32.partialorder %v1411, 0.7853982
    %vm1413 = vcmp.lt.s32.totalorder %v365, 0
    %v1414 = vand.u32 %v365, 2139095040
    %v1415 = vshrl.u32 %v1414, 23
    %v1416 = vsub.s32 %v1415, 127
    %v1417 = vand.u32 2147483647, %v365
    %v1418 = vand.u32 %v1417, 8388607
    %v1419 = vor.u32 %v1418, 8388608
    %v1420 = vsub.s32 0, %v1419
    %v1421 = vadd.s32 %v1416, 1
    %vm1422 = vcmp.gt.s32.totalorder %v1421, 0
    %v1423 = vsel %vm1422, %v1421, 0
    %v1424 = vshrl.u32 %v1423, 5
    %v1425 = vand.u32 %v1423, 31
    %v1426 = vsub.s32 32, %v1425
    %v1427 = vshrl.u32 683565275, %v1426
    %v1428 = vshll.u32 683565275, %v1425
    %v1429 = vshrl.u32 2475754826, %v1426
    %v1430 = vor.u32 %v1428, %v1429
    %v1431 = vshll.u32 2475754826, %v1425
    %v1432 = vshrl.u32 2131351028, %v1426
    %v1433 = vor.u32 %v1431, %v1432
    %v1434 = vshll.u32 2131351028, %v1425
    %v1435 = vshrl.u32 2102212464, %v1426
    %v1436 = vor.u32 %v1434, %v1435
    %v1437 = vshll.u32 2102212464, %v1425
    %v1438 = vshrl.u32 920167782, %v1426
    %v1439 = vor.u32 %v1437, %v1438
    %v1440 = vshll.u32 920167782, %v1425
    %v1441 = vshrl.u32 1326507024, %v1426
    %v1442 = vor.u32 %v1440, %v1441
    %vm1443 = vcmp.lt.s32.totalorder %v1424, 1
    %vm1444 = vcmp.lt.s32.totalorder %v1424, 2
    %vm1445 = vcmp.lt.s32.totalorder %v1424, 3
    %vm1446 = vcmp.lt.s32.totalorder %v1424, 4
    %v1447 = vsel %vm1443, %v1427, %v1430
    %v1448 = vsel %vm1446, %v1436, 2102212464
    %v1449 = vsel %vm1445, %v1433, %v1448
    %v1450 = vsel %vm1444, %v1447, %v1449
    %v1451 = vsel %vm1443, %v1430, %v1433
    %v1452 = vsel %vm1446, %v1439, 920167782
    %v1453 = vsel %vm1445, %v1436, %v1452
    %v1454 = vsel %vm1444, %v1451, %v1453
    %v1455 = vsel %vm1443, %v1433, %v1436
    %v1456 = vsel %vm1446, %v1442, 1326507024
    %v1457 = vsel %vm1445, %v1439, %v1456
    %v1458 = vsel %vm1444, %v1455, %v1457
    %v1459 = vshll.u32 %v1419, 8
    %v1460 = vmul.u32.u64.compose %v1459, %v1458
    %v1461 = vextract.low.u32 %v1460
    %v1462 = vextract.high.u32 %v1460
    %v1463 = vmul.u32.u64.compose %v1459, %v1454
    %v1464 = vextract.low.u32 %v1463
    %v1465 = vextract.high.u32 %v1463
    %v1466 = vmul.u32 %v1459, %v1450
    %v1467 = vadd.s32 %v1462, %v1464
    %vm1468 = vc.u32 %v1462, %v1464
    %v1469 = vadd.s32 %v1465, 1
    %v1470 = vsel %vm1468, %v1469, %v1465
    %v1471 = vadd.s32 %v1466, %v1470
    %v1472 = vadd.s32 %v1471, 536870912
    %v1473 = vshrl.u32 %v1472, 30
    %v1474 = vshll.u32 %v1473, 30
    %v1475 = vsub.s32 %v1471, %v1474
    %vm1476 = vcmp.lt.s32.totalorder %v1475, 0
    %v1477 = vsub.s32 0, %v1475
    %v1478 = vsel %vm1476, %v1477, %v1475
    %v1479 = vclz %v1478
    %v1480 = vsub.s32 %v1479, 2
    %vm1481 = vcmp.gt.s32.totalorder 0, %v1480
    %v1482 = vsel %vm1481, 0, %v1480
    %v1483 = vsub.s32 32, %v1482
    %v1484 = vshll.u32 %v1475, %v1482
    %v1485 = vshrl.u32 %v1467, %v1483
    %v1486 = vor.u32 %v1484, %v1485
    %v1487 = vsub.s32 4294967266, %v1482
    %v1488 = vadd.s32 %v1487, 127
    %v1489 = vshll.u32 %v1488, 23
    %v1490 = vor.u32 4788187, %v1489
    %v1491 = vand.u32 2147483647, %v1490
    %v1493 = vcvt.s32.f32 %v1486
    %v1494 = vmul.f32 %v1493, %v1491
    %v1495 = vxor.u32 %v1494, 2147483648
    %v1496 = vsel %vm1413, %v1495, %v1494
    %v1497 = vsub.s32 4, %v1473
    %v1498 = vsel %vm1413, %v1497, %v1473
    %v1499 = vsel %vm1412, %v365, %v1496
    %v1500 = vsel %vm1412, 0, %v1498
    %v1501 = vcosq.f32.pop %v1499
    %v1502 = vsinq.f32.pop %v1499
    %vm1503 = vweird.f32 %v365
    %v1504 = vadd.s32 %v1500, 3
    %v1505 = vand.u32 %v1504, 3
    %vm1506 = vcmp.lt.s32.totalorder %v1505, 2
    %vm1507 = vcmp.eq.s32.totalorder %v1505, 0
    %v1508 = vxor.u32 %v1502, 2147483648
    %v1509 = vsel %vm1507, %v1501, %v1508
    %vm1510 = vcmp.eq.s32.totalorder %v1505, 2
    %v1511 = vxor.u32 %v1501, 2147483648
    %v1512 = vsel %vm1510, %v1511, %v1502
    %v1513 = vsel %vm1506, %v1509, %v1512
    %v1514 = vsel %vm1503, nan, %v1513
    %v1515 = vand.u32 2147483647, %v366
    %vm1516 = vcmp.le.f32.partialorder %v1515, 0.7853982
    %vm1517 = vcmp.lt.s32.totalorder %v366, 0
    %v1518 = vand.u32 %v366, 2139095040
    %v1519 = vshrl.u32 %v1518, 23
    %v1520 = vsub.s32 %v1519, 127
    %v1521 = vand.u32 2147483647, %v366
    %v1522 = vand.u32 %v1521, 8388607
    %v1523 = vor.u32 %v1522, 8388608
    %v1524 = vsub.s32 0, %v1523
    %v1525 = vadd.s32 %v1520, 1
    %vm1526 = vcmp.gt.s32.totalorder %v1525, 0
    %v1527 = vsel %vm1526, %v1525, 0
    %v1528 = vshrl.u32 %v1527, 5
    %v1529 = vand.u32 %v1527, 31
    %v1530 = vsub.s32 32, %v1529
    %v1531 = vshrl.u32 683565275, %v1530
    %v1532 = vshll.u32 683565275, %v1529
    %v1533 = vshrl.u32 2475754826, %v1530
    %v1534 = vor.u32 %v1532, %v1533
    %v1535 = vshll.u32 2475754826, %v1529
    %v1536 = vshrl.u32 2131351028, %v1530
    %v1537 = vor.u32 %v1535, %v1536
    %v1538 = vshll.u32 2131351028, %v1529
    %v1539 = vshrl.u32 2102212464, %v1530
    %v1540 = vor.u32 %v1538, %v1539
    %v1541 = vshll.u32 2102212464, %v1529
    %v1542 = vshrl.u32 920167782, %v1530
    %v1543 = vor.u32 %v1541, %v1542
    %v1544 = vshll.u32 920167782, %v1529
    %v1545 = vshrl.u32 1326507024, %v1530
    %v1546 = vor.u32 %v1544, %v1545
    %vm1547 = vcmp.lt.s32.totalorder %v1528, 1
    %vm1548 = vcmp.lt.s32.totalorder %v1528, 2
    %vm1549 = vcmp.lt.s32.totalorder %v1528, 3
    %vm1550 = vcmp.lt.s32.totalorder %v1528, 4
    %v1551 = vsel %vm1547, %v1531, %v1534
    %v1552 = vsel %vm1550, %v1540, 2102212464
    %v1553 = vsel %vm1549, %v1537, %v1552
    %v1554 = vsel %vm1548, %v1551, %v1553
    %v1555 = vsel %vm1547, %v1534, %v1537
    %v1556 = vsel %vm1550, %v1543, 920167782
    %v1557 = vsel %vm1549, %v1540, %v1556
    %v1558 = vsel %vm1548, %v1555, %v1557
    %v1559 = vsel %vm1547, %v1537, %v1540
    %v1560 = vsel %vm1550, %v1546, 1326507024
    %v1561 = vsel %vm1549, %v1543, %v1560
    %v1562 = vsel %vm1548, %v1559, %v1561
    %v1563 = vshll.u32 %v1523, 8
    %v1564 = vmul.u32.u64.compose %v1563, %v1562
    %v1565 = vextract.low.u32 %v1564
    %v1566 = vextract.high.u32 %v1564
    %v1567 = vmul.u32.u64.compose %v1563, %v1558
    %v1568 = vextract.low.u32 %v1567
    %v1569 = vextract.high.u32 %v1567
    %v1570 = vmul.u32 %v1563, %v1554
    %v1571 = vadd.s32 %v1566, %v1568
    %vm1572 = vc.u32 %v1566, %v1568
    %v1573 = vadd.s32 %v1569, 1
    %v1574 = vsel %vm1572, %v1573, %v1569
    %v1575 = vadd.s32 %v1570, %v1574
    %v1576 = vadd.s32 %v1575, 536870912
    %v1577 = vshrl.u32 %v1576, 30
    %v1578 = vshll.u32 %v1577, 30
    %v1579 = vsub.s32 %v1575, %v1578
    %vm1580 = vcmp.lt.s32.totalorder %v1579, 0
    %v1581 = vsub.s32 0, %v1579
    %v1582 = vsel %vm1580, %v1581, %v1579
    %v1583 = vclz %v1582
    %v1584 = vsub.s32 %v1583, 2
    %vm1585 = vcmp.gt.s32.totalorder 0, %v1584
    %v1586 = vsel %vm1585, 0, %v1584
    %v1587 = vsub.s32 32, %v1586
    %v1588 = vshll.u32 %v1579, %v1586
    %v1589 = vshrl.u32 %v1571, %v1587
    %v1590 = vor.u32 %v1588, %v1589
    %v1591 = vsub.s32 4294967266, %v1586
    %v1592 = vadd.s32 %v1591, 127
    %v1593 = vshll.u32 %v1592, 23
    %v1594 = vor.u32 4788187, %v1593
    %v1595 = vand.u32 2147483647, %v1594
    %v1597 = vcvt.s32.f32 %v1590
    %v1598 = vmul.f32 %v1597, %v1595
    %v1599 = vxor.u32 %v1598, 2147483648
    %v1600 = vsel %vm1517, %v1599, %v1598
    %v1601 = vsub.s32 4, %v1577
    %v1602 = vsel %vm1517, %v1601, %v1577
    %v1603 = vsel %vm1516, %v366, %v1600
    %v1604 = vsel %vm1516, 0, %v1602
    %v1605 = vcosq.f32.pop %v1603
    %v1606 = vsinq.f32.pop %v1603
    %vm1607 = vweird.f32 %v366
    %v1608 = vadd.s32 %v1604, 3
    %v1609 = vand.u32 %v1608, 3
    %vm1610 = vcmp.lt.s32.totalorder %v1609, 2
    %vm1611 = vcmp.eq.s32.totalorder %v1609, 0
    %v1612 = vxor.u32 %v1606, 2147483648
    %v1613 = vsel %vm1611, %v1605, %v1612
    %vm1614 = vcmp.eq.s32.totalorder %v1609, 2
    %v1615 = vxor.u32 %v1605, 2147483648
    %v1616 = vsel %vm1614, %v1615, %v1606
    %v1617 = vsel %vm1610, %v1613, %v1616
    %v1618 = vsel %vm1607, nan, %v1617
    %v1619 = vand.u32 2147483647, %v367
    %vm1620 = vcmp.le.f32.partialorder %v1619, 0.7853982
    %vm1621 = vcmp.lt.s32.totalorder %v367, 0
    %v1622 = vand.u32 %v367, 2139095040
    %v1623 = vshrl.u32 %v1622, 23
    %v1624 = vsub.s32 %v1623, 127
    %v1625 = vand.u32 2147483647, %v367
    %v1626 = vand.u32 %v1625, 8388607
    %v1627 = vor.u32 %v1626, 8388608
    %v1628 = vsub.s32 0, %v1627
    %v1629 = vadd.s32 %v1624, 1
    %vm1630 = vcmp.gt.s32.totalorder %v1629, 0
    %v1631 = vsel %vm1630, %v1629, 0
    %v1632 = vshrl.u32 %v1631, 5
    %v1633 = vand.u32 %v1631, 31
    %v1634 = vsub.s32 32, %v1633
    %v1635 = vshrl.u32 683565275, %v1634
    %v1636 = vshll.u32 683565275, %v1633
    %v1637 = vshrl.u32 2475754826, %v1634
    %v1638 = vor.u32 %v1636, %v1637
    %v1639 = vshll.u32 2475754826, %v1633
    %v1640 = vshrl.u32 2131351028, %v1634
    %v1641 = vor.u32 %v1639, %v1640
    %v1642 = vshll.u32 2131351028, %v1633
    %v1643 = vshrl.u32 2102212464, %v1634
    %v1644 = vor.u32 %v1642, %v1643
    %v1645 = vshll.u32 2102212464, %v1633
    %v1646 = vshrl.u32 920167782, %v1634
    %v1647 = vor.u32 %v1645, %v1646
    %v1648 = vshll.u32 920167782, %v1633
    %v1649 = vshrl.u32 1326507024, %v1634
    %v1650 = vor.u32 %v1648, %v1649
    %vm1651 = vcmp.lt.s32.totalorder %v1632, 1
    %vm1652 = vcmp.lt.s32.totalorder %v1632, 2
    %vm1653 = vcmp.lt.s32.totalorder %v1632, 3
    %vm1654 = vcmp.lt.s32.totalorder %v1632, 4
    %v1655 = vsel %vm1651, %v1635, %v1638
    %v1656 = vsel %vm1654, %v1644, 2102212464
    %v1657 = vsel %vm1653, %v1641, %v1656
    %v1658 = vsel %vm1652, %v1655, %v1657
    %v1659 = vsel %vm1651, %v1638, %v1641
    %v1660 = vsel %vm1654, %v1647, 920167782
    %v1661 = vsel %vm1653, %v1644, %v1660
    %v1662 = vsel %vm1652, %v1659, %v1661
    %v1663 = vsel %vm1651, %v1641, %v1644
    %v1664 = vsel %vm1654, %v1650, 1326507024
    %v1665 = vsel %vm1653, %v1647, %v1664
    %v1666 = vsel %vm1652, %v1663, %v1665
    %v1667 = vshll.u32 %v1627, 8
    %v1668 = vmul.u32.u64.compose %v1667, %v1666
    %v1669 = vextract.low.u32 %v1668
    %v1670 = vextract.high.u32 %v1668
    %v1671 = vmul.u32.u64.compose %v1667, %v1662
    %v1672 = vextract.low.u32 %v1671
    %v1673 = vextract.high.u32 %v1671
    %v1674 = vmul.u32 %v1667, %v1658
    %v1675 = vadd.s32 %v1670, %v1672
    %vm1676 = vc.u32 %v1670, %v1672
    %v1677 = vadd.s32 %v1673, 1
    %v1678 = vsel %vm1676, %v1677, %v1673
    %v1679 = vadd.s32 %v1674, %v1678
    %v1680 = vadd.s32 %v1679, 536870912
    %v1681 = vshrl.u32 %v1680, 30
    %v1682 = vshll.u32 %v1681, 30
    %v1683 = vsub.s32 %v1679, %v1682
    %vm1684 = vcmp.lt.s32.totalorder %v1683, 0
    %v1685 = vsub.s32 0, %v1683
    %v1686 = vsel %vm1684, %v1685, %v1683
    %v1687 = vclz %v1686
    %v1688 = vsub.s32 %v1687, 2
    %vm1689 = vcmp.gt.s32.totalorder 0, %v1688
    %v1690 = vsel %vm1689, 0, %v1688
    %v1691 = vsub.s32 32, %v1690
    %v1692 = vshll.u32 %v1683, %v1690
    %v1693 = vshrl.u32 %v1675, %v1691
    %v1694 = vor.u32 %v1692, %v1693
    %v1695 = vsub.s32 4294967266, %v1690
    %v1696 = vadd.s32 %v1695, 127
    %v1697 = vshll.u32 %v1696, 23
    %v1698 = vor.u32 4788187, %v1697
    %v1699 = vand.u32 2147483647, %v1698
    %v1701 = vcvt.s32.f32 %v1694
    %v1702 = vmul.f32 %v1701, %v1699
    %v1703 = vxor.u32 %v1702, 2147483648
    %v1704 = vsel %vm1621, %v1703, %v1702
    %v1705 = vsub.s32 4, %v1681
    %v1706 = vsel %vm1621, %v1705, %v1681
    %v1707 = vsel %vm1620, %v367, %v1704
    %v1708 = vsel %vm1620, 0, %v1706
    %v1709 = vcosq.f32.pop %v1707
    %v1710 = vsinq.f32.pop %v1707
    %vm1711 = vweird.f32 %v367
    %v1712 = vadd.s32 %v1708, 3
    %v1713 = vand.u32 %v1712, 3
    %vm1714 = vcmp.lt.s32.totalorder %v1713, 2
    %vm1715 = vcmp.eq.s32.totalorder %v1713, 0
    %v1716 = vxor.u32 %v1710, 2147483648
    %v1717 = vsel %vm1715, %v1709, %v1716
    %vm1718 = vcmp.eq.s32.totalorder %v1713, 2
    %v1719 = vxor.u32 %v1709, 2147483648
    %v1720 = vsel %vm1718, %v1719, %v1710
    %v1721 = vsel %vm1714, %v1717, %v1720
    %v1722 = vsel %vm1711, nan, %v1721
    %v1723 = vand.u32 2147483647, %v368
    %vm1724 = vcmp.le.f32.partialorder %v1723, 0.7853982
    %vm1725 = vcmp.lt.s32.totalorder %v368, 0
    %v1726 = vand.u32 %v368, 2139095040
    %v1727 = vshrl.u32 %v1726, 23
    %v1728 = vsub.s32 %v1727, 127
    %v1729 = vand.u32 2147483647, %v368
    %v1730 = vand.u32 %v1729, 8388607
    %v1731 = vor.u32 %v1730, 8388608
    %v1732 = vsub.s32 0, %v1731
    %v1733 = vadd.s32 %v1728, 1
    %vm1734 = vcmp.gt.s32.totalorder %v1733, 0
    %v1735 = vsel %vm1734, %v1733, 0
    %v1736 = vshrl.u32 %v1735, 5
    %v1737 = vand.u32 %v1735, 31
    %v1738 = vsub.s32 32, %v1737
    %v1739 = vshrl.u32 683565275, %v1738
    %v1740 = vshll.u32 683565275, %v1737
    %v1741 = vshrl.u32 2475754826, %v1738
    %v1742 = vor.u32 %v1740, %v1741
    %v1743 = vshll.u32 2475754826, %v1737
    %v1744 = vshrl.u32 2131351028, %v1738
    %v1745 = vor.u32 %v1743, %v1744
    %v1746 = vshll.u32 2131351028, %v1737
    %v1747 = vshrl.u32 2102212464, %v1738
    %v1748 = vor.u32 %v1746, %v1747
    %v1749 = vshll.u32 2102212464, %v1737
    %v1750 = vshrl.u32 920167782, %v1738
    %v1751 = vor.u32 %v1749, %v1750
    %v1752 = vshll.u32 920167782, %v1737
    %v1753 = vshrl.u32 1326507024, %v1738
    %v1754 = vor.u32 %v1752, %v1753
    %vm1755 = vcmp.lt.s32.totalorder %v1736, 1
    %vm1756 = vcmp.lt.s32.totalorder %v1736, 2
    %vm1757 = vcmp.lt.s32.totalorder %v1736, 3
    %vm1758 = vcmp.lt.s32.totalorder %v1736, 4
    %v1759 = vsel %vm1755, %v1739, %v1742
    %v1760 = vsel %vm1758, %v1748, 2102212464
    %v1761 = vsel %vm1757, %v1745, %v1760
    %v1762 = vsel %vm1756, %v1759, %v1761
    %v1763 = vsel %vm1755, %v1742, %v1745
    %v1764 = vsel %vm1758, %v1751, 920167782
    %v1765 = vsel %vm1757, %v1748, %v1764
    %v1766 = vsel %vm1756, %v1763, %v1765
    %v1767 = vsel %vm1755, %v1745, %v1748
    %v1768 = vsel %vm1758, %v1754, 1326507024
    %v1769 = vsel %vm1757, %v1751, %v1768
    %v1770 = vsel %vm1756, %v1767, %v1769
    %v1771 = vshll.u32 %v1731, 8
    %v1772 = vmul.u32.u64.compose %v1771, %v1770
    %v1773 = vextract.low.u32 %v1772
    %v1774 = vextract.high.u32 %v1772
    %v1775 = vmul.u32.u64.compose %v1771, %v1766
    %v1776 = vextract.low.u32 %v1775
    %v1777 = vextract.high.u32 %v1775
    %v1778 = vmul.u32 %v1771, %v1762
    %v1779 = vadd.s32 %v1774, %v1776
    %vm1780 = vc.u32 %v1774, %v1776
    %v1781 = vadd.s32 %v1777, 1
    %v1782 = vsel %vm1780, %v1781, %v1777
    %v1783 = vadd.s32 %v1778, %v1782
    %v1784 = vadd.s32 %v1783, 536870912
    %v1785 = vshrl.u32 %v1784, 30
    %v1786 = vshll.u32 %v1785, 30
    %v1787 = vsub.s32 %v1783, %v1786
    %vm1788 = vcmp.lt.s32.totalorder %v1787, 0
    %v1789 = vsub.s32 0, %v1787
    %v1790 = vsel %vm1788, %v1789, %v1787
    %v1791 = vclz %v1790
    %v1792 = vsub.s32 %v1791, 2
    %vm1793 = vcmp.gt.s32.totalorder 0, %v1792
    %v1794 = vsel %vm1793, 0, %v1792
    %v1795 = vsub.s32 32, %v1794
    %v1796 = vshll.u32 %v1787, %v1794
    %v1797 = vshrl.u32 %v1779, %v1795
    %v1798 = vor.u32 %v1796, %v1797
    %v1799 = vsub.s32 4294967266, %v1794
    %v1800 = vadd.s32 %v1799, 127
    %v1801 = vshll.u32 %v1800, 23
    %v1802 = vor.u32 4788187, %v1801
    %v1803 = vand.u32 2147483647, %v1802
    %v1805 = vcvt.s32.f32 %v1798
    %v1806 = vmul.f32 %v1805, %v1803
    %v1807 = vxor.u32 %v1806, 2147483648
    %v1808 = vsel %vm1725, %v1807, %v1806
    %v1809 = vsub.s32 4, %v1785
    %v1810 = vsel %vm1725, %v1809, %v1785
    %v1811 = vsel %vm1724, %v368, %v1808
    %v1812 = vsel %vm1724, 0, %v1810
    %v1813 = vcosq.f32.pop %v1811
    %v1814 = vsinq.f32.pop %v1811
    %vm1815 = vweird.f32 %v368
    %v1816 = vadd.s32 %v1812, 3
    %v1817 = vand.u32 %v1816, 3
    %vm1818 = vcmp.lt.s32.totalorder %v1817, 2
    %vm1819 = vcmp.eq.s32.totalorder %v1817, 0
    %v1820 = vxor.u32 %v1814, 2147483648
    %v1821 = vsel %vm1819, %v1813, %v1820
    %vm1822 = vcmp.eq.s32.totalorder %v1817, 2
    %v1823 = vxor.u32 %v1813, 2147483648
    %v1824 = vsel %vm1822, %v1823, %v1814
    %v1825 = vsel %vm1818, %v1821, %v1824
    %v1826 = vsel %vm1815, nan, %v1825
    %v1827 = vand.u32 2147483647, %v369
    %vm1828 = vcmp.le.f32.partialorder %v1827, 0.7853982
    %vm1829 = vcmp.lt.s32.totalorder %v369, 0
    %v1830 = vand.u32 %v369, 2139095040
    %v1831 = vshrl.u32 %v1830, 23
    %v1832 = vsub.s32 %v1831, 127
    %v1833 = vand.u32 2147483647, %v369
    %v1834 = vand.u32 %v1833, 8388607
    %v1835 = vor.u32 %v1834, 8388608
    %v1836 = vsub.s32 0, %v1835
    %v1837 = vadd.s32 %v1832, 1
    %vm1838 = vcmp.gt.s32.totalorder %v1837, 0
    %v1839 = vsel %vm1838, %v1837, 0
    %v1840 = vshrl.u32 %v1839, 5
    %v1841 = vand.u32 %v1839, 31
    %v1842 = vsub.s32 32, %v1841
    %v1843 = vshrl.u32 683565275, %v1842
    %v1844 = vshll.u32 683565275, %v1841
    %v1845 = vshrl.u32 2475754826, %v1842
    %v1846 = vor.u32 %v1844, %v1845
    %v1847 = vshll.u32 2475754826, %v1841
    %v1848 = vshrl.u32 2131351028, %v1842
    %v1849 = vor.u32 %v1847, %v1848
    %v1850 = vshll.u32 2131351028, %v1841
    %v1851 = vshrl.u32 2102212464, %v1842
    %v1852 = vor.u32 %v1850, %v1851
    %v1853 = vshll.u32 2102212464, %v1841
    %v1854 = vshrl.u32 920167782, %v1842
    %v1855 = vor.u32 %v1853, %v1854
    %v1856 = vshll.u32 920167782, %v1841
    %v1857 = vshrl.u32 1326507024, %v1842
    %v1858 = vor.u32 %v1856, %v1857
    %vm1859 = vcmp.lt.s32.totalorder %v1840, 1
    %vm1860 = vcmp.lt.s32.totalorder %v1840, 2
    %vm1861 = vcmp.lt.s32.totalorder %v1840, 3
    %vm1862 = vcmp.lt.s32.totalorder %v1840, 4
    %v1863 = vsel %vm1859, %v1843, %v1846
    %v1864 = vsel %vm1862, %v1852, 2102212464
    %v1865 = vsel %vm1861, %v1849, %v1864
    %v1866 = vsel %vm1860, %v1863, %v1865
    %v1867 = vsel %vm1859, %v1846, %v1849
    %v1868 = vsel %vm1862, %v1855, 920167782
    %v1869 = vsel %vm1861, %v1852, %v1868
    %v1870 = vsel %vm1860, %v1867, %v1869
    %v1871 = vsel %vm1859, %v1849, %v1852
    %v1872 = vsel %vm1862, %v1858, 1326507024
    %v1873 = vsel %vm1861, %v1855, %v1872
    %v1874 = vsel %vm1860, %v1871, %v1873
    %v1875 = vshll.u32 %v1835, 8
    %v1876 = vmul.u32.u64.compose %v1875, %v1874
    %v1877 = vextract.low.u32 %v1876
    %v1878 = vextract.high.u32 %v1876
    %v1879 = vmul.u32.u64.compose %v1875, %v1870
    %v1880 = vextract.low.u32 %v1879
    %v1881 = vextract.high.u32 %v1879
    %v1882 = vmul.u32 %v1875, %v1866
    %v1883 = vadd.s32 %v1878, %v1880
    %vm1884 = vc.u32 %v1878, %v1880
    %v1885 = vadd.s32 %v1881, 1
    %v1886 = vsel %vm1884, %v1885, %v1881
    %v1887 = vadd.s32 %v1882, %v1886
    %v1888 = vadd.s32 %v1887, 536870912
    %v1889 = vshrl.u32 %v1888, 30
    %v1890 = vshll.u32 %v1889, 30
    %v1891 = vsub.s32 %v1887, %v1890
    %vm1892 = vcmp.lt.s32.totalorder %v1891, 0
    %v1893 = vsub.s32 0, %v1891
    %v1894 = vsel %vm1892, %v1893, %v1891
    %v1895 = vclz %v1894
    %v1896 = vsub.s32 %v1895, 2
    %vm1897 = vcmp.gt.s32.totalorder 0, %v1896
    %v1898 = vsel %vm1897, 0, %v1896
    %v1899 = vsub.s32 32, %v1898
    %v1900 = vshll.u32 %v1891, %v1898
    %v1901 = vshrl.u32 %v1883, %v1899
    %v1902 = vor.u32 %v1900, %v1901
    %v1903 = vsub.s32 4294967266, %v1898
    %v1904 = vadd.s32 %v1903, 127
    %v1905 = vshll.u32 %v1904, 23
    %v1906 = vor.u32 4788187, %v1905
    %v1907 = vand.u32 2147483647, %v1906
    %v1909 = vcvt.s32.f32 %v1902
    %v1910 = vmul.f32 %v1909, %v1907
    %v1911 = vxor.u32 %v1910, 2147483648
    %v1912 = vsel %vm1829, %v1911, %v1910
    %v1913 = vsub.s32 4, %v1889
    %v1914 = vsel %vm1829, %v1913, %v1889
    %v1915 = vsel %vm1828, %v369, %v1912
    %v1916 = vsel %vm1828, 0, %v1914
    %v1917 = vcosq.f32.pop %v1915
    %v1918 = vsinq.f32.pop %v1915
    %vm1919 = vweird.f32 %v369
    %v1920 = vadd.s32 %v1916, 3
    %v1921 = vand.u32 %v1920, 3
    %vm1922 = vcmp.lt.s32.totalorder %v1921, 2
    %vm1923 = vcmp.eq.s32.totalorder %v1921, 0
    %v1924 = vxor.u32 %v1918, 2147483648
    %v1925 = vsel %vm1923, %v1917, %v1924
    %vm1926 = vcmp.eq.s32.totalorder %v1921, 2
    %v1927 = vxor.u32 %v1917, 2147483648
    %v1928 = vsel %vm1926, %v1927, %v1918
    %v1929 = vsel %vm1922, %v1925, %v1928
    %v1930 = vsel %vm1919, nan, %v1929
    %v1931 = vand.u32 2147483647, %v370
    %vm1932 = vcmp.le.f32.partialorder %v1931, 0.7853982
    %vm1933 = vcmp.lt.s32.totalorder %v370, 0
    %v1934 = vand.u32 %v370, 2139095040
    %v1935 = vshrl.u32 %v1934, 23
    %v1936 = vsub.s32 %v1935, 127
    %v1937 = vand.u32 2147483647, %v370
    %v1938 = vand.u32 %v1937, 8388607
    %v1939 = vor.u32 %v1938, 8388608
    %v1940 = vsub.s32 0, %v1939
    %v1941 = vadd.s32 %v1936, 1
    %vm1942 = vcmp.gt.s32.totalorder %v1941, 0
    %v1943 = vsel %vm1942, %v1941, 0
    %v1944 = vshrl.u32 %v1943, 5
    %v1945 = vand.u32 %v1943, 31
    %v1946 = vsub.s32 32, %v1945
    %v1947 = vshrl.u32 683565275, %v1946
    %v1948 = vshll.u32 683565275, %v1945
    %v1949 = vshrl.u32 2475754826, %v1946
    %v1950 = vor.u32 %v1948, %v1949
    %v1951 = vshll.u32 2475754826, %v1945
    %v1952 = vshrl.u32 2131351028, %v1946
    %v1953 = vor.u32 %v1951, %v1952
    %v1954 = vshll.u32 2131351028, %v1945
    %v1955 = vshrl.u32 2102212464, %v1946
    %v1956 = vor.u32 %v1954, %v1955
    %v1957 = vshll.u32 2102212464, %v1945
    %v1958 = vshrl.u32 920167782, %v1946
    %v1959 = vor.u32 %v1957, %v1958
    %v1960 = vshll.u32 920167782, %v1945
    %v1961 = vshrl.u32 1326507024, %v1946
    %v1962 = vor.u32 %v1960, %v1961
    %vm1963 = vcmp.lt.s32.totalorder %v1944, 1
    %vm1964 = vcmp.lt.s32.totalorder %v1944, 2
    %vm1965 = vcmp.lt.s32.totalorder %v1944, 3
    %vm1966 = vcmp.lt.s32.totalorder %v1944, 4
    %v1967 = vsel %vm1963, %v1947, %v1950
    %v1968 = vsel %vm1966, %v1956, 2102212464
    %v1969 = vsel %vm1965, %v1953, %v1968
    %v1970 = vsel %vm1964, %v1967, %v1969
    %v1971 = vsel %vm1963, %v1950, %v1953
    %v1972 = vsel %vm1966, %v1959, 920167782
    %v1973 = vsel %vm1965, %v1956, %v1972
    %v1974 = vsel %vm1964, %v1971, %v1973
    %v1975 = vsel %vm1963, %v1953, %v1956
    %v1976 = vsel %vm1966, %v1962, 1326507024
    %v1977 = vsel %vm1965, %v1959, %v1976
    %v1978 = vsel %vm1964, %v1975, %v1977
    %v1979 = vshll.u32 %v1939, 8
    %v1980 = vmul.u32.u64.compose %v1979, %v1978
    %v1981 = vextract.low.u32 %v1980
    %v1982 = vextract.high.u32 %v1980
    %v1983 = vmul.u32.u64.compose %v1979, %v1974
    %v1984 = vextract.low.u32 %v1983
    %v1985 = vextract.high.u32 %v1983
    %v1986 = vmul.u32 %v1979, %v1970
    %v1987 = vadd.s32 %v1982, %v1984
    %vm1988 = vc.u32 %v1982, %v1984
    %v1989 = vadd.s32 %v1985, 1
    %v1990 = vsel %vm1988, %v1989, %v1985
    %v1991 = vadd.s32 %v1986, %v1990
    %v1992 = vadd.s32 %v1991, 536870912
    %v1993 = vshrl.u32 %v1992, 30
    %v1994 = vshll.u32 %v1993, 30
    %v1995 = vsub.s32 %v1991, %v1994
    %vm1996 = vcmp.lt.s32.totalorder %v1995, 0
    %v1997 = vsub.s32 0, %v1995
    %v1998 = vsel %vm1996, %v1997, %v1995
    %v1999 = vclz %v1998
    %v2000 = vsub.s32 %v1999, 2
    %vm2001 = vcmp.gt.s32.totalorder 0, %v2000
    %v2002 = vsel %vm2001, 0, %v2000
    %v2003 = vsub.s32 32, %v2002
    %v2004 = vshll.u32 %v1995, %v2002
    %v2005 = vshrl.u32 %v1987, %v2003
    %v2006 = vor.u32 %v2004, %v2005
    %v2007 = vsub.s32 4294967266, %v2002
    %v2008 = vadd.s32 %v2007, 127
    %v2009 = vshll.u32 %v2008, 23
    %v2010 = vor.u32 4788187, %v2009
    %v2011 = vand.u32 2147483647, %v2010
    %v2013 = vcvt.s32.f32 %v2006
    %v2014 = vmul.f32 %v2013, %v2011
    %v2015 = vxor.u32 %v2014, 2147483648
    %v2016 = vsel %vm1933, %v2015, %v2014
    %v2017 = vsub.s32 4, %v1993
    %v2018 = vsel %vm1933, %v2017, %v1993
    %v2019 = vsel %vm1932, %v370, %v2016
    %v2020 = vsel %vm1932, 0, %v2018
    %v2021 = vcosq.f32.pop %v2019
    %v2022 = vsinq.f32.pop %v2019
    %vm2023 = vweird.f32 %v370
    %v2024 = vadd.s32 %v2020, 3
    %v2025 = vand.u32 %v2024, 3
    %vm2026 = vcmp.lt.s32.totalorder %v2025, 2
    %vm2027 = vcmp.eq.s32.totalorder %v2025, 0
    %v2028 = vxor.u32 %v2022, 2147483648
    %v2029 = vsel %vm2027, %v2021, %v2028
    %vm2030 = vcmp.eq.s32.totalorder %v2025, 2
    %v2031 = vxor.u32 %v2021, 2147483648
    %v2032 = vsel %vm2030, %v2031, %v2022
    %v2033 = vsel %vm2026, %v2029, %v2032
    %v2034 = vsel %vm2023, nan, %v2033
    %v2035 = vmul.f32 %v355, %v1306
    %v2036 = vmul.f32 %v356, %v1410
    %v2037 = vmul.f32 %v357, %v1514
    %v2038 = vmul.f32 %v358, %v1618
    %v2039 = vmul.f32 %v359, %v1722
    %v2040 = vmul.f32 %v360, %v1826
    %v2041 = vmul.f32 %v361, %v1930
    %v2042 = vmul.f32 %v362, %v2034
    %v2043 = vld [vmem:[#allocation4] sm:$0xff]
    %v2044 = vld [vmem:[#allocation4 + $0x8] sm:$0xff]
    %v2045 = vld [vmem:[#allocation4 + $0x10] sm:$0xff]
    %v2046 = vld [vmem:[#allocation4 + $0x18] sm:$0xff]
    %v2047 = vld [vmem:[#allocation4 + $0x20] sm:$0xff]
    %v2048 = vld [vmem:[#allocation4 + $0x28] sm:$0xff]
    %v2049 = vld [vmem:[#allocation4 + $0x30] sm:$0xff]
    %v2050 = vld [vmem:[#allocation4 + $0x38] sm:$0xff]
    %v2051 = vld [vmem:[#allocation4 + $0x40] sm:$0xff]
    %v2052 = vld [vmem:[#allocation4 + $0x48] sm:$0xff]
    %v2053 = vld [vmem:[#allocation4 + $0x50] sm:$0xff]
    %v2054 = vld [vmem:[#allocation4 + $0x58] sm:$0xff]
    %v2055 = vld [vmem:[#allocation4 + $0x60] sm:$0xff]
    %v2056 = vld [vmem:[#allocation4 + $0x68] sm:$0xff]
    %v2057 = vld [vmem:[#allocation4 + $0x70] sm:$0xff]
    %v2058 = vld [vmem:[#allocation4 + $0x78] sm:$0xff]
    %v2075 = vcombine.low %v1195, %v1196
    %v2076 = vcombine.high %v1195, %v1196
    %v2077 = vcombine.low %v1197, %v1198
    %v2078 = vcombine.high %v1197, %v1198
    %v2080 = vunpack.c.l.s4 1983009808
    %v2081 = vunpack.c.0.s8 %v2080
    %v2082 = vlaneseq
    %v2083 = vshrl.u32 %v2082, 7
    %v2084 = vsub.s32 %v2081, %v2083
    %v2085 = vrot.slane %v2075, %v2084
    %v2087 = vunpack.c.l.s4 1983009808
    %v2088 = vunpack.c.0.s8 %v2087
    %v2089 = vlaneseq
    %v2090 = vshrl.u32 %v2089, 7
    %v2091 = vsub.s32 %v2088, %v2090
    %v2092 = vrot.slane %v2076, %v2091
    %v2094 = vunpack.c.l.s4 1983009808
    %v2095 = vunpack.c.0.s8 %v2094
    %v2096 = vlaneseq
    %v2097 = vshrl.u32 %v2096, 7
    %v2098 = vsub.s32 %v2095, %v2097
    %v2099 = vrot.slane %v2077, %v2098
    %v2101 = vunpack.c.l.s4 1983009808
    %v2102 = vunpack.c.0.s8 %v2101
    %v2103 = vlaneseq
    %v2104 = vshrl.u32 %v2103, 7
    %v2105 = vsub.s32 %v2102, %v2104
    %v2106 = vrot.slane %v2078, %v2105
    %v2107 = vcombine.low %v2085, %v2099
    %v2108 = vcombine.high %v2085, %v2099
    %v2109 = vcombine.low %v2092, %v2106
    %v2110 = vcombine.high %v2092, %v2106
    %v2111 = vcombine.low %v1199, %v1200
    %v2112 = vcombine.high %v1199, %v1200
    %v2113 = vcombine.low %v1201, %v1202
    %v2114 = vcombine.high %v1201, %v1202
    %v2116 = vunpack.c.l.s4 1983009808
    %v2117 = vunpack.c.0.s8 %v2116
    %v2118 = vlaneseq
    %v2119 = vshrl.u32 %v2118, 7
    %v2120 = vsub.s32 %v2117, %v2119
    %v2121 = vrot.slane %v2111, %v2120
    %v2123 = vunpack.c.l.s4 1983009808
    %v2124 = vunpack.c.0.s8 %v2123
    %v2125 = vlaneseq
    %v2126 = vshrl.u32 %v2125, 7
    %v2127 = vsub.s32 %v2124, %v2126
    %v2128 = vrot.slane %v2112, %v2127
    %v2130 = vunpack.c.l.s4 1983009808
    %v2131 = vunpack.c.0.s8 %v2130
    %v2132 = vlaneseq
    %v2133 = vshrl.u32 %v2132, 7
    %v2134 = vsub.s32 %v2131, %v2133
    %v2135 = vrot.slane %v2113, %v2134
    %v2137 = vunpack.c.l.s4 1983009808
    %v2138 = vunpack.c.0.s8 %v2137
    %v2139 = vlaneseq
    %v2140 = vshrl.u32 %v2139, 7
    %v2141 = vsub.s32 %v2138, %v2140
    %v2142 = vrot.slane %v2114, %v2141
    %v2143 = vcombine.low %v2121, %v2135
    %v2144 = vcombine.high %v2121, %v2135
    %v2145 = vcombine.low %v2128, %v2142
    %v2146 = vcombine.high %v2128, %v2142
    %v2147 = vcombine.low %v2035, %v2036
    %v2148 = vcombine.high %v2035, %v2036
    %v2149 = vcombine.low %v2037, %v2038
    %v2150 = vcombine.high %v2037, %v2038
    %v2152 = vunpack.c.l.s4 1983009808
    %v2153 = vunpack.c.0.s8 %v2152
    %v2154 = vlaneseq
    %v2155 = vshrl.u32 %v2154, 7
    %v2156 = vsub.s32 %v2153, %v2155
    %v2157 = vrot.slane %v2147, %v2156
    %v2159 = vunpack.c.l.s4 1983009808
    %v2160 = vunpack.c.0.s8 %v2159
    %v2161 = vlaneseq
    %v2162 = vshrl.u32 %v2161, 7
    %v2163 = vsub.s32 %v2160, %v2162
    %v2164 = vrot.slane %v2148, %v2163
    %v2166 = vunpack.c.l.s4 1983009808
    %v2167 = vunpack.c.0.s8 %v2166
    %v2168 = vlaneseq
    %v2169 = vshrl.u32 %v2168, 7
    %v2170 = vsub.s32 %v2167, %v2169
    %v2171 = vrot.slane %v2149, %v2170
    %v2173 = vunpack.c.l.s4 1983009808
    %v2174 = vunpack.c.0.s8 %v2173
    %v2175 = vlaneseq
    %v2176 = vshrl.u32 %v2175, 7
    %v2177 = vsub.s32 %v2174, %v2176
    %v2178 = vrot.slane %v2150, %v2177
    %v2179 = vcombine.low %v2157, %v2171
    %v2180 = vcombine.high %v2157, %v2171
    %v2181 = vcombine.low %v2164, %v2178
    %v2182 = vcombine.high %v2164, %v2178
    %v2183 = vcombine.low %v2039, %v2040
    %v2184 = vcombine.high %v2039, %v2040
    %v2185 = vcombine.low %v2041, %v2042
    %v2186 = vcombine.high %v2041, %v2042
    %v2188 = vunpack.c.l.s4 1983009808
    %v2189 = vunpack.c.0.s8 %v2188
    %v2190 = vlaneseq
    %v2191 = vshrl.u32 %v2190, 7
    %v2192 = vsub.s32 %v2189, %v2191
    %v2193 = vrot.slane %v2183, %v2192
    %v2195 = vunpack.c.l.s4 1983009808
    %v2196 = vunpack.c.0.s8 %v2195
    %v2197 = vlaneseq
    %v2198 = vshrl.u32 %v2197, 7
    %v2199 = vsub.s32 %v2196, %v2198
    %v2200 = vrot.slane %v2184, %v2199
    %v2202 = vunpack.c.l.s4 1983009808
    %v2203 = vunpack.c.0.s8 %v2202
    %v2204 = vlaneseq
    %v2205 = vshrl.u32 %v2204, 7
    %v2206 = vsub.s32 %v2203, %v2205
    %v2207 = vrot.slane %v2185, %v2206
    %v2209 = vunpack.c.l.s4 1983009808
    %v2210 = vunpack.c.0.s8 %v2209
    %v2211 = vlaneseq
    %v2212 = vshrl.u32 %v2211, 7
    %v2213 = vsub.s32 %v2210, %v2212
    %v2214 = vrot.slane %v2186, %v2213
    %v2215 = vcombine.low %v2193, %v2207
    %v2216 = vcombine.high %v2193, %v2207
    %v2217 = vcombine.low %v2200, %v2214
    %v2218 = vcombine.high %v2200, %v2214
    %v2235 = vadd.f32 %v2043, %v2107
    %v2236 = vadd.f32 %v2044, %v2143
    %v2237 = vadd.f32 %v2045, %v2108
    %v2238 = vadd.f32 %v2046, %v2144
    %v2239 = vadd.f32 %v2047, %v2109
    %v2240 = vadd.f32 %v2048, %v2145
    %v2241 = vadd.f32 %v2049, %v2110
    %v2242 = vadd.f32 %v2050, %v2146
    %v2243 = vadd.f32 %v2051, %v2179
    %v2244 = vadd.f32 %v2052, %v2215
    %v2245 = vadd.f32 %v2053, %v2180
    %v2246 = vadd.f32 %v2054, %v2216
    %v2247 = vadd.f32 %v2055, %v2181
    %v2248 = vadd.f32 %v2056, %v2217
    %v2249 = vadd.f32 %v2057, %v2182
    %v2250 = vadd.f32 %v2058, %v2218
    %2251 = vst [vmem:[#allocation7] sm:$0xff] %v2235
    %2252 = vst [vmem:[#allocation7 + $0x8] sm:$0xff] %v2236
    %2253 = vst [vmem:[#allocation7 + $0x10] sm:$0xff] %v2237
    %2254 = vst [vmem:[#allocation7 + $0x18] sm:$0xff] %v2238
    %2255 = vst [vmem:[#allocation7 + $0x20] sm:$0xff] %v2239
    %2256 = vst [vmem:[#allocation7 + $0x28] sm:$0xff] %v2240
    %2257 = vst [vmem:[#allocation7 + $0x30] sm:$0xff] %v2241
    %2258 = vst [vmem:[#allocation7 + $0x38] sm:$0xff] %v2242
    %2259 = vst [vmem:[#allocation7 + $0x40] sm:$0xff] %v2243
    %2260 = vst [vmem:[#allocation7 + $0x48] sm:$0xff] %v2244
    %2261 = vst [vmem:[#allocation7 + $0x50] sm:$0xff] %v2245
    %2262 = vst [vmem:[#allocation7 + $0x58] sm:$0xff] %v2246
    %2263 = vst [vmem:[#allocation7 + $0x60] sm:$0xff] %v2247
    %2264 = vst [vmem:[#allocation7 + $0x68] sm:$0xff] %v2248
    %2265 = vst [vmem:[#allocation7 + $0x70] sm:$0xff] %v2249
    %2266 = vst [vmem:[#allocation7 + $0x78] sm:$0xff] %v2250
    // Predicated region
    $region10: #{tpu_custom_call.1} parent=1 // pred_check
      _
    $region11: #{tpu_custom_call.1} parent=1 // pred_check_branch
      %2268 = sbr.rel (0) target = $region13
    $region12: #{tpu_custom_call.1} parent=1 // pred_region
      %s2270 = ssub.s32 2048, 256
      %2271 = vsyncadd [#allocation6], %s2270
      %s2272 = sshll.u32 [#allocation7], 4
      %s2273 = int_to_ptr.vmem [resolvable:$true] %s2272
      %2278 = dma.vmem_to_hbm [thread:$0]  %s2273, 256, %s2, [#allocation6], 256, 256, 16
    $region13: #{tpu_custom_call.1} parent=1 // pred_fallthru
      _
    // Predicated region
    $region14: #{tpu_custom_call.1} parent=1 // pred_check
      _
    $region15: #{tpu_custom_call.1} parent=1 // pred_check_branch
      %2280 = sbr.rel (0) target = $region17
    $region16: #{tpu_custom_call.1} parent=1 // pred_region
      %2281 = dma.done [#allocation6], 2048
    $region17: #{tpu_custom_call.1} parent=1 // pred_fallthru
      _
    %2282 = vsyncpa [#allocation5], 1
    %2283 = vsyncpa [#allocation6], 1

</llo_original>
